<compile_context>
chip_gen: v7x
topology: tpu7x:2x2x1
jax: 0.10.0
libtpu: 0.0.40
codegen_flags: <defaults>
</compile_context>

<pallas_src>
import functools

import jax
import jax.numpy as jnp
from jax.experimental import pallas as pl
from jax.experimental.pallas import tpu as pltpu


def lstm_kernel(x_ref, wih_ref, whh_ref, b_ref, wfc_ref, bfc_ref, out_ref,
                *, seq_len, batch_pad, hidden_pad):
    T, Bp, Hp = seq_len, batch_pad, hidden_pad

    # (1) Hoisted input projection: one MXU pass over all T*Bp rows.
    #     x_ref: (T*Bp, D), wih_ref: (D, 4*Hp), b_ref: (1, 4*Hp)
    xproj = (jnp.dot(x_ref[...], wih_ref[...],
                     preferred_element_type=jnp.float32)
             + b_ref[...])                                    # (T*Bp, 4*Hp)

    whh = whh_ref[...]                                        # (Hp, 4*Hp)

    h = jnp.zeros((Bp, Hp), jnp.float32)
    c = jnp.zeros((Bp, Hp), jnp.float32)

    # (2) Recurrence, fully unrolled (T is small & static). h/c live in vregs.
    #     Gate slices are 128-lane aligned because Hp is a multiple of 128.
    for t in range(T):
        gates = xproj[t * Bp:(t + 1) * Bp, :] + jnp.dot(
            h, whh, preferred_element_type=jnp.float32)       # (Bp, 4*Hp)
        i_g = jax.nn.sigmoid(gates[:, 0 * Hp:1 * Hp])
        f_g = jax.nn.sigmoid(gates[:, 1 * Hp:2 * Hp])
        g_g = jnp.tanh(gates[:, 2 * Hp:3 * Hp])
        o_g = jax.nn.sigmoid(gates[:, 3 * Hp:4 * Hp])
        c = f_g * c + i_g * g_g
        h = o_g * jnp.tanh(c)

    # (3) FC head as a straight-line epilogue (one-off lane-narrow store is fine).
    out_ref[...] = (jnp.dot(h, wfc_ref[...],
                            preferred_element_type=jnp.float32)
                    + bfc_ref[...]).astype(out_ref.dtype)


def emotion_lstm_forward(x, params):
    """x: (B, T, D) float32, batch_first like the PyTorch module."""
    B, T, D = x.shape
    H = params["w_hh"].shape[1]          # w_hh: (4H, H) PyTorch layout
    O = params["w_fc"].shape[0]          # w_fc: (O, H)

    Hp = ((H + 127) // 128) * 128        # lane-aligned per-gate width
    Bp = ((B + 7) // 8) * 8              # f32 sublane-aligned batch

    # --- per-gate zero padding of the weights / biases (gate order i,f,g,o) ---
    w_ih = params["w_ih"].reshape(4, H, D)
    w_hh = params["w_hh"].reshape(4, H, H)
    bias = (params["b_ih"] + params["b_hh"]).reshape(4, H)

    wih_p = jnp.zeros((4, Hp, D), jnp.float32).at[:, :H, :].set(w_ih)
    whh_p = jnp.zeros((4, Hp, Hp), jnp.float32).at[:, :H, :H].set(w_hh)
    b_p = jnp.zeros((4, Hp), jnp.float32).at[:, :H].set(bias)

    wih_t = wih_p.reshape(4 * Hp, D).T                        # (D, 4*Hp)
    whh_t = whh_p.reshape(4 * Hp, Hp).T                       # (Hp, 4*Hp)
    b_row = b_p.reshape(1, 4 * Hp)                            # (1, 4*Hp)

    wfc_t = jnp.zeros((Hp, O), jnp.float32).at[:H, :].set(params["w_fc"].T)
    bfc = params["b_fc"].reshape(1, O)                        # (1, O)

    # --- time-major, batch-padded, flattened input for the hoisted projection ---
    x_tm = jnp.transpose(x, (1, 0, 2))                        # (T, B, D)
    x_pad = jnp.zeros((T, Bp, D), jnp.float32).at[:, :B, :].set(x_tm)
    x_flat = x_pad.reshape(T * Bp, D)                         # (T*Bp, D)

    out = pl.pallas_call(
        functools.partial(lstm_kernel, seq_len=T, batch_pad=Bp, hidden_pad=Hp),
        out_shape=jax.ShapeDtypeStruct((Bp, O), jnp.float32),
        in_specs=[pl.BlockSpec(memory_space=pltpu.MemorySpace.VMEM)] * 6,
        out_specs=pl.BlockSpec(memory_space=pltpu.MemorySpace.VMEM),
    )(x_flat, wih_t, whh_t, b_row, wfc_t, bfc)

    return out[:B].astype(x.dtype)


def reference_forward(x, params):
    """Pure-JAX reference matching PyTorch nn.LSTM + nn.Linear semantics."""
    w_ih, w_hh = params["w_ih"], params["w_hh"]
    b = params["b_ih"] + params["b_hh"]
    H = w_hh.shape[1]
    B = x.shape[0]

    def step(carry, x_t):
        h, c = carry
        gates = x_t @ w_ih.T + h @ w_hh.T + b
        i, f, g, o = jnp.split(gates, 4, axis=-1)
        c = jax.nn.sigmoid(f) * c + jax.nn.sigmoid(i) * jnp.tanh(g)
        h = jax.nn.sigmoid(o) * jnp.tanh(c)
        return (h, c), None

    h0 = jnp.zeros((B, H), jnp.float32)
    (h_last, _), _ = jax.lax.scan(step, (h0, h0), jnp.transpose(x, (1, 0, 2)))
    return h_last @ params["w_fc"].T + params["b_fc"]


if __name__ == "__main__":
    B, T, D, H, O = 4, 8, 7, 64, 8   # batch, seq, input_size, hidden, output

    key = jax.random.PRNGKey(0)
    keys = jax.random.split(key, 7)
    k = 1.0 / (H ** 0.5)             # PyTorch default uniform(-1/sqrt(H), 1/sqrt(H))
    params = {
        "w_ih": jax.random.uniform(keys[0], (4 * H, D), jnp.float32, -k, k),
        "w_hh": jax.random.uniform(keys[1], (4 * H, H), jnp.float32, -k, k),
        "b_ih": jax.random.uniform(keys[2], (4 * H,), jnp.float32, -k, k),
        "b_hh": jax.random.uniform(keys[3], (4 * H,), jnp.float32, -k, k),
        "w_fc": jax.random.uniform(keys[4], (O, H), jnp.float32, -k, k),
        "b_fc": jax.random.uniform(keys[5], (O,), jnp.float32, -k, k),
    }
    x = jax.random.normal(keys[6], (B, T, D), jnp.float32)

    out = emotion_lstm_forward(x, params)
    out = jax.block_until_ready(out)

    ref = reference_forward(x, params)
    assert out.shape == (B, O)
    assert jnp.allclose(out, ref, atol=1e-4, rtol=1e-4), "mismatch vs reference"

    print("KERNEL_OK")
</pallas_src>

<mosaic_0001>
module attributes {stable_mosaic.version = 11 : i64} {
  func.func @lstm_kernel(%arg0: memref<64x7xf32, #tpu.memory_space<vmem>>, %arg1: memref<7x512xf32, #tpu.memory_space<vmem>>, %arg2: memref<128x512xf32, #tpu.memory_space<vmem>>, %arg3: memref<1x512xf32, #tpu.memory_space<vmem>>, %arg4: memref<128x8xf32, #tpu.memory_space<vmem>>, %arg5: memref<1x8xf32, #tpu.memory_space<vmem>>, %arg6: memref<8x8xf32, #tpu.memory_space<vmem>>) attributes {dimension_semantics = [], scalar_prefetch = 0 : i64, scratch_operands = 0 : i64, tpu.core_type = #tpu.core_type<tc>} {
    %c0 = arith.constant 0 : index
    %c0_0 = arith.constant 0 : index
    %0 = vector.load %arg0[%c0, %c0_0] : memref<64x7xf32, #tpu.memory_space<vmem>>, vector<64x7xf32>
    %c0_1 = arith.constant 0 : index
    %c0_2 = arith.constant 0 : index
    %1 = vector.load %arg1[%c0_1, %c0_2] : memref<7x512xf32, #tpu.memory_space<vmem>>, vector<7x512xf32>
    %cst = arith.constant dense<0.000000e+00> : vector<64x512xf32>
    %2 = tpu.matmul %0, %1, %cst {dimension_numbers = #tpu.dot_dimension_numbers<[1], [0], [0], [1], [0, 0, 1, 1], [], []>} : vector<64x7xf32>, vector<7x512xf32>, vector<64x512xf32> -> vector<64x512xf32>
    %c0_3 = arith.constant 0 : index
    %c0_4 = arith.constant 0 : index
    %3 = vector.load %arg3[%c0_3, %c0_4] : memref<1x512xf32, #tpu.memory_space<vmem>>, vector<1x512xf32>
    %4 = vector.broadcast %3 : vector<1x512xf32> to vector<64x512xf32>
    %5 = arith.addf %2, %4 : vector<64x512xf32>
    %c0_5 = arith.constant 0 : index
    %c0_6 = arith.constant 0 : index
    %6 = vector.load %arg2[%c0_5, %c0_6] : memref<128x512xf32, #tpu.memory_space<vmem>>, vector<128x512xf32>
    %cst_7 = arith.constant 0.000000e+00 : f32
    %7 = vector.broadcast %cst_7 : f32 to vector<8x128xf32>
    %cst_8 = arith.constant 0.000000e+00 : f32
    %8 = vector.broadcast %cst_8 : f32 to vector<8x128xf32>
    %9 = vector.extract_strided_slice %5 {offsets = [0, 0], sizes = [8, 512], strides = [1, 1]} : vector<64x512xf32> to vector<8x512xf32>
    %cst_9 = arith.constant dense<0.000000e+00> : vector<8x512xf32>
    %10 = tpu.matmul %7, %6, %cst_9 {dimension_numbers = #tpu.dot_dimension_numbers<[1], [0], [0], [1], [0, 0, 1, 1], [], []>} : vector<8x128xf32>, vector<128x512xf32>, vector<8x512xf32> -> vector<8x512xf32>
    %11 = arith.addf %9, %10 : vector<8x512xf32>
    %12 = vector.extract_strided_slice %11 {offsets = [0, 0], sizes = [8, 128], strides = [1, 1]} : vector<8x512xf32> to vector<8x128xf32>
    %13 = arith.negf %12 : vector<8x128xf32>
    %14 = math.exp %13 : vector<8x128xf32>
    %cst_10 = arith.constant 1.000000e+00 : f32
    %15 = vector.broadcast %cst_10 : f32 to vector<8x128xf32>
    %16 = arith.addf %15, %14 : vector<8x128xf32>
    %17 = arith.divf %15, %16 : vector<8x128xf32>
    %18 = vector.extract_strided_slice %11 {offsets = [0, 128], sizes = [8, 128], strides = [1, 1]} : vector<8x512xf32> to vector<8x128xf32>
    %19 = arith.negf %18 : vector<8x128xf32>
    %20 = math.exp %19 : vector<8x128xf32>
    %cst_11 = arith.constant 1.000000e+00 : f32
    %21 = vector.broadcast %cst_11 : f32 to vector<8x128xf32>
    %22 = arith.addf %21, %20 : vector<8x128xf32>
    %23 = arith.divf %21, %22 : vector<8x128xf32>
    %24 = vector.extract_strided_slice %11 {offsets = [0, 256], sizes = [8, 128], strides = [1, 1]} : vector<8x512xf32> to vector<8x128xf32>
    %25 = math.tanh %24 : vector<8x128xf32>
    %26 = vector.extract_strided_slice %11 {offsets = [0, 384], sizes = [8, 128], strides = [1, 1]} : vector<8x512xf32> to vector<8x128xf32>
    %27 = arith.negf %26 : vector<8x128xf32>
    %28 = math.exp %27 : vector<8x128xf32>
    %cst_12 = arith.constant 1.000000e+00 : f32
    %29 = vector.broadcast %cst_12 : f32 to vector<8x128xf32>
    %30 = arith.addf %29, %28 : vector<8x128xf32>
    %31 = arith.divf %29, %30 : vector<8x128xf32>
    %32 = arith.mulf %23, %8 : vector<8x128xf32>
    %33 = arith.mulf %17, %25 : vector<8x128xf32>
    %34 = arith.addf %32, %33 : vector<8x128xf32>
    %35 = math.tanh %34 : vector<8x128xf32>
    %36 = arith.mulf %31, %35 : vector<8x128xf32>
    %37 = vector.extract_strided_slice %5 {offsets = [8, 0], sizes = [8, 512], strides = [1, 1]} : vector<64x512xf32> to vector<8x512xf32>
    %cst_13 = arith.constant dense<0.000000e+00> : vector<8x512xf32>
    %38 = tpu.matmul %36, %6, %cst_13 {dimension_numbers = #tpu.dot_dimension_numbers<[1], [0], [0], [1], [0, 0, 1, 1], [], []>} : vector<8x128xf32>, vector<128x512xf32>, vector<8x512xf32> -> vector<8x512xf32>
    %39 = arith.addf %37, %38 : vector<8x512xf32>
    %40 = vector.extract_strided_slice %39 {offsets = [0, 0], sizes = [8, 128], strides = [1, 1]} : vector<8x512xf32> to vector<8x128xf32>
    %41 = arith.negf %40 : vector<8x128xf32>
    %42 = math.exp %41 : vector<8x128xf32>
    %cst_14 = arith.constant 1.000000e+00 : f32
    %43 = vector.broadcast %cst_14 : f32 to vector<8x128xf32>
    %44 = arith.addf %43, %42 : vector<8x128xf32>
    %45 = arith.divf %43, %44 : vector<8x128xf32>
    %46 = vector.extract_strided_slice %39 {offsets = [0, 128], sizes = [8, 128], strides = [1, 1]} : vector<8x512xf32> to vector<8x128xf32>
    %47 = arith.negf %46 : vector<8x128xf32>
    %48 = math.exp %47 : vector<8x128xf32>
    %cst_15 = arith.constant 1.000000e+00 : f32
    %49 = vector.broadcast %cst_15 : f32 to vector<8x128xf32>
    %50 = arith.addf %49, %48 : vector<8x128xf32>
    %51 = arith.divf %49, %50 : vector<8x128xf32>
    %52 = vector.extract_strided_slice %39 {offsets = [0, 256], sizes = [8, 128], strides = [1, 1]} : vector<8x512xf32> to vector<8x128xf32>
    %53 = math.tanh %52 : vector<8x128xf32>
    %54 = vector.extract_strided_slice %39 {offsets = [0, 384], sizes = [8, 128], strides = [1, 1]} : vector<8x512xf32> to vector<8x128xf32>
    %55 = arith.negf %54 : vector<8x128xf32>
    %56 = math.exp %55 : vector<8x128xf32>
    %cst_16 = arith.constant 1.000000e+00 : f32
    %57 = vector.broadcast %cst_16 : f32 to vector<8x128xf32>
    %58 = arith.addf %57, %56 : vector<8x128xf32>
    %59 = arith.divf %57, %58 : vector<8x128xf32>
    %60 = arith.mulf %51, %34 : vector<8x128xf32>
    %61 = arith.mulf %45, %53 : vector<8x128xf32>
    %62 = arith.addf %60, %61 : vector<8x128xf32>
    %63 = math.tanh %62 : vector<8x128xf32>
    %64 = arith.mulf %59, %63 : vector<8x128xf32>
    %65 = vector.extract_strided_slice %5 {offsets = [16, 0], sizes = [8, 512], strides = [1, 1]} : vector<64x512xf32> to vector<8x512xf32>
    %cst_17 = arith.constant dense<0.000000e+00> : vector<8x512xf32>
    %66 = tpu.matmul %64, %6, %cst_17 {dimension_numbers = #tpu.dot_dimension_numbers<[1], [0], [0], [1], [0, 0, 1, 1], [], []>} : vector<8x128xf32>, vector<128x512xf32>, vector<8x512xf32> -> vector<8x512xf32>
    %67 = arith.addf %65, %66 : vector<8x512xf32>
    %68 = vector.extract_strided_slice %67 {offsets = [0, 0], sizes = [8, 128], strides = [1, 1]} : vector<8x512xf32> to vector<8x128xf32>
    %69 = arith.negf %68 : vector<8x128xf32>
    %70 = math.exp %69 : vector<8x128xf32>
    %cst_18 = arith.constant 1.000000e+00 : f32
    %71 = vector.broadcast %cst_18 : f32 to vector<8x128xf32>
    %72 = arith.addf %71, %70 : vector<8x128xf32>
    %73 = arith.divf %71, %72 : vector<8x128xf32>
    %74 = vector.extract_strided_slice %67 {offsets = [0, 128], sizes = [8, 128], strides = [1, 1]} : vector<8x512xf32> to vector<8x128xf32>
    %75 = arith.negf %74 : vector<8x128xf32>
    %76 = math.exp %75 : vector<8x128xf32>
    %cst_19 = arith.constant 1.000000e+00 : f32
    %77 = vector.broadcast %cst_19 : f32 to vector<8x128xf32>
    %78 = arith.addf %77, %76 : vector<8x128xf32>
    %79 = arith.divf %77, %78 : vector<8x128xf32>
    %80 = vector.extract_strided_slice %67 {offsets = [0, 256], sizes = [8, 128], strides = [1, 1]} : vector<8x512xf32> to vector<8x128xf32>
    %81 = math.tanh %80 : vector<8x128xf32>
    %82 = vector.extract_strided_slice %67 {offsets = [0, 384], sizes = [8, 128], strides = [1, 1]} : vector<8x512xf32> to vector<8x128xf32>
    %83 = arith.negf %82 : vector<8x128xf32>
    %84 = math.exp %83 : vector<8x128xf32>
    %cst_20 = arith.constant 1.000000e+00 : f32
    %85 = vector.broadcast %cst_20 : f32 to vector<8x128xf32>
    %86 = arith.addf %85, %84 : vector<8x128xf32>
    %87 = arith.divf %85, %86 : vector<8x128xf32>
    %88 = arith.mulf %79, %62 : vector<8x128xf32>
    %89 = arith.mulf %73, %81 : vector<8x128xf32>
    %90 = arith.addf %88, %89 : vector<8x128xf32>
    %91 = math.tanh %90 : vector<8x128xf32>
    %92 = arith.mulf %87, %91 : vector<8x128xf32>
    %93 = vector.extract_strided_slice %5 {offsets = [24, 0], sizes = [8, 512], strides = [1, 1]} : vector<64x512xf32> to vector<8x512xf32>
    %cst_21 = arith.constant dense<0.000000e+00> : vector<8x512xf32>
    %94 = tpu.matmul %92, %6, %cst_21 {dimension_numbers = #tpu.dot_dimension_numbers<[1], [0], [0], [1], [0, 0, 1, 1], [], []>} : vector<8x128xf32>, vector<128x512xf32>, vector<8x512xf32> -> vector<8x512xf32>
    %95 = arith.addf %93, %94 : vector<8x512xf32>
    %96 = vector.extract_strided_slice %95 {offsets = [0, 0], sizes = [8, 128], strides = [1, 1]} : vector<8x512xf32> to vector<8x128xf32>
    %97 = arith.negf %96 : vector<8x128xf32>
    %98 = math.exp %97 : vector<8x128xf32>
    %cst_22 = arith.constant 1.000000e+00 : f32
    %99 = vector.broadcast %cst_22 : f32 to vector<8x128xf32>
    %100 = arith.addf %99, %98 : vector<8x128xf32>
    %101 = arith.divf %99, %100 : vector<8x128xf32>
    %102 = vector.extract_strided_slice %95 {offsets = [0, 128], sizes = [8, 128], strides = [1, 1]} : vector<8x512xf32> to vector<8x128xf32>
    %103 = arith.negf %102 : vector<8x128xf32>
    %104 = math.exp %103 : vector<8x128xf32>
    %cst_23 = arith.constant 1.000000e+00 : f32
    %105 = vector.broadcast %cst_23 : f32 to vector<8x128xf32>
    %106 = arith.addf %105, %104 : vector<8x128xf32>
    %107 = arith.divf %105, %106 : vector<8x128xf32>
    %108 = vector.extract_strided_slice %95 {offsets = [0, 256], sizes = [8, 128], strides = [1, 1]} : vector<8x512xf32> to vector<8x128xf32>
    %109 = math.tanh %108 : vector<8x128xf32>
    %110 = vector.extract_strided_slice %95 {offsets = [0, 384], sizes = [8, 128], strides = [1, 1]} : vector<8x512xf32> to vector<8x128xf32>
    %111 = arith.negf %110 : vector<8x128xf32>
    %112 = math.exp %111 : vector<8x128xf32>
    %cst_24 = arith.constant 1.000000e+00 : f32
    %113 = vector.broadcast %cst_24 : f32 to vector<8x128xf32>
    %114 = arith.addf %113, %112 : vector<8x128xf32>
    %115 = arith.divf %113, %114 : vector<8x128xf32>
    %116 = arith.mulf %107, %90 : vector<8x128xf32>
    %117 = arith.mulf %101, %109 : vector<8x128xf32>
    %118 = arith.addf %116, %117 : vector<8x128xf32>
    %119 = math.tanh %118 : vector<8x128xf32>
    %120 = arith.mulf %115, %119 : vector<8x128xf32>
    %121 = vector.extract_strided_slice %5 {offsets = [32, 0], sizes = [8, 512], strides = [1, 1]} : vector<64x512xf32> to vector<8x512xf32>
    %cst_25 = arith.constant dense<0.000000e+00> : vector<8x512xf32>
    %122 = tpu.matmul %120, %6, %cst_25 {dimension_numbers = #tpu.dot_dimension_numbers<[1], [0], [0], [1], [0, 0, 1, 1], [], []>} : vector<8x128xf32>, vector<128x512xf32>, vector<8x512xf32> -> vector<8x512xf32>
    %123 = arith.addf %121, %122 : vector<8x512xf32>
    %124 = vector.extract_strided_slice %123 {offsets = [0, 0], sizes = [8, 128], strides = [1, 1]} : vector<8x512xf32> to vector<8x128xf32>
    %125 = arith.negf %124 : vector<8x128xf32>
    %126 = math.exp %125 : vector<8x128xf32>
    %cst_26 = arith.constant 1.000000e+00 : f32
    %127 = vector.broadcast %cst_26 : f32 to vector<8x128xf32>
    %128 = arith.addf %127, %126 : vector<8x128xf32>
    %129 = arith.divf %127, %128 : vector<8x128xf32>
    %130 = vector.extract_strided_slice %123 {offsets = [0, 128], sizes = [8, 128], strides = [1, 1]} : vector<8x512xf32> to vector<8x128xf32>
    %131 = arith.negf %130 : vector<8x128xf32>
    %132 = math.exp %131 : vector<8x128xf32>
    %cst_27 = arith.constant 1.000000e+00 : f32
    %133 = vector.broadcast %cst_27 : f32 to vector<8x128xf32>
    %134 = arith.addf %133, %132 : vector<8x128xf32>
    %135 = arith.divf %133, %134 : vector<8x128xf32>
    %136 = vector.extract_strided_slice %123 {offsets = [0, 256], sizes = [8, 128], strides = [1, 1]} : vector<8x512xf32> to vector<8x128xf32>
    %137 = math.tanh %136 : vector<8x128xf32>
    %138 = vector.extract_strided_slice %123 {offsets = [0, 384], sizes = [8, 128], strides = [1, 1]} : vector<8x512xf32> to vector<8x128xf32>
    %139 = arith.negf %138 : vector<8x128xf32>
    %140 = math.exp %139 : vector<8x128xf32>
    %cst_28 = arith.constant 1.000000e+00 : f32
    %141 = vector.broadcast %cst_28 : f32 to vector<8x128xf32>
    %142 = arith.addf %141, %140 : vector<8x128xf32>
    %143 = arith.divf %141, %142 : vector<8x128xf32>
    %144 = arith.mulf %135, %118 : vector<8x128xf32>
    %145 = arith.mulf %129, %137 : vector<8x128xf32>
    %146 = arith.addf %144, %145 : vector<8x128xf32>
    %147 = math.tanh %146 : vector<8x128xf32>
    %148 = arith.mulf %143, %147 : vector<8x128xf32>
    %149 = vector.extract_strided_slice %5 {offsets = [40, 0], sizes = [8, 512], strides = [1, 1]} : vector<64x512xf32> to vector<8x512xf32>
    %cst_29 = arith.constant dense<0.000000e+00> : vector<8x512xf32>
    %150 = tpu.matmul %148, %6, %cst_29 {dimension_numbers = #tpu.dot_dimension_numbers<[1], [0], [0], [1], [0, 0, 1, 1], [], []>} : vector<8x128xf32>, vector<128x512xf32>, vector<8x512xf32> -> vector<8x512xf32>
    %151 = arith.addf %149, %150 : vector<8x512xf32>
    %152 = vector.extract_strided_slice %151 {offsets = [0, 0], sizes = [8, 128], strides = [1, 1]} : vector<8x512xf32> to vector<8x128xf32>
    %153 = arith.negf %152 : vector<8x128xf32>
    %154 = math.exp %153 : vector<8x128xf32>
    %cst_30 = arith.constant 1.000000e+00 : f32
    %155 = vector.broadcast %cst_30 : f32 to vector<8x128xf32>
    %156 = arith.addf %155, %154 : vector<8x128xf32>
    %157 = arith.divf %155, %156 : vector<8x128xf32>
    %158 = vector.extract_strided_slice %151 {offsets = [0, 128], sizes = [8, 128], strides = [1, 1]} : vector<8x512xf32> to vector<8x128xf32>
    %159 = arith.negf %158 : vector<8x128xf32>
    %160 = math.exp %159 : vector<8x128xf32>
    %cst_31 = arith.constant 1.000000e+00 : f32
    %161 = vector.broadcast %cst_31 : f32 to vector<8x128xf32>
    %162 = arith.addf %161, %160 : vector<8x128xf32>
    %163 = arith.divf %161, %162 : vector<8x128xf32>
    %164 = vector.extract_strided_slice %151 {offsets = [0, 256], sizes = [8, 128], strides = [1, 1]} : vector<8x512xf32> to vector<8x128xf32>
    %165 = math.tanh %164 : vector<8x128xf32>
    %166 = vector.extract_strided_slice %151 {offsets = [0, 384], sizes = [8, 128], strides = [1, 1]} : vector<8x512xf32> to vector<8x128xf32>
    %167 = arith.negf %166 : vector<8x128xf32>
    %168 = math.exp %167 : vector<8x128xf32>
    %cst_32 = arith.constant 1.000000e+00 : f32
    %169 = vector.broadcast %cst_32 : f32 to vector<8x128xf32>
    %170 = arith.addf %169, %168 : vector<8x128xf32>
    %171 = arith.divf %169, %170 : vector<8x128xf32>
    %172 = arith.mulf %163, %146 : vector<8x128xf32>
    %173 = arith.mulf %157, %165 : vector<8x128xf32>
    %174 = arith.addf %172, %173 : vector<8x128xf32>
    %175 = math.tanh %174 : vector<8x128xf32>
    %176 = arith.mulf %171, %175 : vector<8x128xf32>
    %177 = vector.extract_strided_slice %5 {offsets = [48, 0], sizes = [8, 512], strides = [1, 1]} : vector<64x512xf32> to vector<8x512xf32>
    %cst_33 = arith.constant dense<0.000000e+00> : vector<8x512xf32>
    %178 = tpu.matmul %176, %6, %cst_33 {dimension_numbers = #tpu.dot_dimension_numbers<[1], [0], [0], [1], [0, 0, 1, 1], [], []>} : vector<8x128xf32>, vector<128x512xf32>, vector<8x512xf32> -> vector<8x512xf32>
    %179 = arith.addf %177, %178 : vector<8x512xf32>
    %180 = vector.extract_strided_slice %179 {offsets = [0, 0], sizes = [8, 128], strides = [1, 1]} : vector<8x512xf32> to vector<8x128xf32>
    %181 = arith.negf %180 : vector<8x128xf32>
    %182 = math.exp %181 : vector<8x128xf32>
    %cst_34 = arith.constant 1.000000e+00 : f32
    %183 = vector.broadcast %cst_34 : f32 to vector<8x128xf32>
    %184 = arith.addf %183, %182 : vector<8x128xf32>
    %185 = arith.divf %183, %184 : vector<8x128xf32>
    %186 = vector.extract_strided_slice %179 {offsets = [0, 128], sizes = [8, 128], strides = [1, 1]} : vector<8x512xf32> to vector<8x128xf32>
    %187 = arith.negf %186 : vector<8x128xf32>
    %188 = math.exp %187 : vector<8x128xf32>
    %cst_35 = arith.constant 1.000000e+00 : f32
    %189 = vector.broadcast %cst_35 : f32 to vector<8x128xf32>
    %190 = arith.addf %189, %188 : vector<8x128xf32>
    %191 = arith.divf %189, %190 : vector<8x128xf32>
    %192 = vector.extract_strided_slice %179 {offsets = [0, 256], sizes = [8, 128], strides = [1, 1]} : vector<8x512xf32> to vector<8x128xf32>
    %193 = math.tanh %192 : vector<8x128xf32>
    %194 = vector.extract_strided_slice %179 {offsets = [0, 384], sizes = [8, 128], strides = [1, 1]} : vector<8x512xf32> to vector<8x128xf32>
    %195 = arith.negf %194 : vector<8x128xf32>
    %196 = math.exp %195 : vector<8x128xf32>
    %cst_36 = arith.constant 1.000000e+00 : f32
    %197 = vector.broadcast %cst_36 : f32 to vector<8x128xf32>
    %198 = arith.addf %197, %196 : vector<8x128xf32>
    %199 = arith.divf %197, %198 : vector<8x128xf32>
    %200 = arith.mulf %191, %174 : vector<8x128xf32>
    %201 = arith.mulf %185, %193 : vector<8x128xf32>
    %202 = arith.addf %200, %201 : vector<8x128xf32>
    %203 = math.tanh %202 : vector<8x128xf32>
    %204 = arith.mulf %199, %203 : vector<8x128xf32>
    %205 = vector.extract_strided_slice %5 {offsets = [56, 0], sizes = [8, 512], strides = [1, 1]} : vector<64x512xf32> to vector<8x512xf32>
    %cst_37 = arith.constant dense<0.000000e+00> : vector<8x512xf32>
    %206 = tpu.matmul %204, %6, %cst_37 {dimension_numbers = #tpu.dot_dimension_numbers<[1], [0], [0], [1], [0, 0, 1, 1], [], []>} : vector<8x128xf32>, vector<128x512xf32>, vector<8x512xf32> -> vector<8x512xf32>
    %207 = arith.addf %205, %206 : vector<8x512xf32>
    %208 = vector.extract_strided_slice %207 {offsets = [0, 0], sizes = [8, 128], strides = [1, 1]} : vector<8x512xf32> to vector<8x128xf32>
    %209 = arith.negf %208 : vector<8x128xf32>
    %210 = math.exp %209 : vector<8x128xf32>
    %cst_38 = arith.constant 1.000000e+00 : f32
    %211 = vector.broadcast %cst_38 : f32 to vector<8x128xf32>
    %212 = arith.addf %211, %210 : vector<8x128xf32>
    %213 = arith.divf %211, %212 : vector<8x128xf32>
    %214 = vector.extract_strided_slice %207 {offsets = [0, 128], sizes = [8, 128], strides = [1, 1]} : vector<8x512xf32> to vector<8x128xf32>
    %215 = arith.negf %214 : vector<8x128xf32>
    %216 = math.exp %215 : vector<8x128xf32>
    %cst_39 = arith.constant 1.000000e+00 : f32
    %217 = vector.broadcast %cst_39 : f32 to vector<8x128xf32>
    %218 = arith.addf %217, %216 : vector<8x128xf32>
    %219 = arith.divf %217, %218 : vector<8x128xf32>
    %220 = vector.extract_strided_slice %207 {offsets = [0, 256], sizes = [8, 128], strides = [1, 1]} : vector<8x512xf32> to vector<8x128xf32>
    %221 = math.tanh %220 : vector<8x128xf32>
    %222 = vector.extract_strided_slice %207 {offsets = [0, 384], sizes = [8, 128], strides = [1, 1]} : vector<8x512xf32> to vector<8x128xf32>
    %223 = arith.negf %222 : vector<8x128xf32>
    %224 = math.exp %223 : vector<8x128xf32>
    %cst_40 = arith.constant 1.000000e+00 : f32
    %225 = vector.broadcast %cst_40 : f32 to vector<8x128xf32>
    %226 = arith.addf %225, %224 : vector<8x128xf32>
    %227 = arith.divf %225, %226 : vector<8x128xf32>
    %228 = arith.mulf %219, %202 : vector<8x128xf32>
    %229 = arith.mulf %213, %221 : vector<8x128xf32>
    %230 = arith.addf %228, %229 : vector<8x128xf32>
    %231 = math.tanh %230 : vector<8x128xf32>
    %232 = arith.mulf %227, %231 : vector<8x128xf32>
    %c0_41 = arith.constant 0 : index
    %c0_42 = arith.constant 0 : index
    %233 = vector.load %arg4[%c0_41, %c0_42] : memref<128x8xf32, #tpu.memory_space<vmem>>, vector<128x8xf32>
    %cst_43 = arith.constant dense<0.000000e+00> : vector<8x8xf32>
    %234 = tpu.matmul %232, %233, %cst_43 {dimension_numbers = #tpu.dot_dimension_numbers<[1], [0], [0], [1], [0, 0, 1, 1], [], []>} : vector<8x128xf32>, vector<128x8xf32>, vector<8x8xf32> -> vector<8x8xf32>
    %c0_44 = arith.constant 0 : index
    %c0_45 = arith.constant 0 : index
    %235 = vector.load %arg5[%c0_44, %c0_45] : memref<1x8xf32, #tpu.memory_space<vmem>>, vector<1x8xf32>
    %236 = vector.broadcast %235 : vector<1x8xf32> to vector<8x8xf32>
    %237 = arith.addf %234, %236 : vector<8x8xf32>
    %c0_46 = arith.constant 0 : index
    %c0_47 = arith.constant 0 : index
    %238 = vector.load %arg6[%c0_46, %c0_47] : memref<8x8xf32, #tpu.memory_space<vmem>>, vector<8x8xf32>
    tpu.vector_store %arg6[%c0_46, %c0_47], %237 {strides = array<i32>} : memref<8x8xf32, #tpu.memory_space<vmem>>, vector<8x8xf32>,
    return
  }
}

</mosaic_0001>

<llo_original>
// kernel: tpu_custom_call.1
$region0: #{tpu_custom_call.1}
  #allocation0 [shape = 'u32[]', space=smem, size = 0x4, offset = 0x4, fixed_abs, tag = 'smem constant byte address 0x4 - core index']
  #allocation1 [shape = 'u32[144,128]{1,0:T(1,128)}', space=vmem, size = 0x12000, scoped, tag = 'internal scratch']
  %s0 = inlined_call_operand.vmem [shape: f32[64,7], index: 0, kind: input, shape index: {}]
  %s1 = inlined_call_operand.vmem [shape: f32[7,512], index: 1, kind: input, shape index: {}]
  %s2 = inlined_call_operand.hbm [shape: f32[128,512], index: 2, kind: input, shape index: {}]
  %s3 = inlined_call_operand.vmem [shape: f32[1,512], index: 3, kind: input, shape index: {}]
  %s4 = inlined_call_operand.vmem [shape: f32[128,8], index: 4, kind: input, shape index: {}]
  %s5 = inlined_call_operand.vmem [shape: f32[1,8], index: 5, kind: input, shape index: {}]
  %s6 = inlined_call_operand.hbm [shape: f32[8,8], index: 6, kind: output, shape index: {}]
  %s7 = sld [smem:[#allocation0]]
  $region38: #{tpu_custom_call.1} parent=0
    _
  %s9 = ssub.s32 1, %s7
  %s10 = scalar_select 0, %s9, %s7
  $region1: #{tpu_custom_call.1} parent=0
    #allocation2 [shape = 'u8[262144]{0}', space=vmem, size = 0x40000, scoped, tag = 'input window, operand 2, single buffered']
    #allocation3 [shape = 's32[1]{0}', space=sflag, size = 0x4, scoped, tag = 'scoped memory for tpu_custom_call.1']
    #allocation4 [shape = 's32[1]{0}', space=sflag, size = 0x4, scoped, tag = 'scoped memory for tpu_custom_call.1']
    #allocation5 [shape = 'u8[4096]{0}', space=vmem, size = 0x1000, scoped, tag = 'output window, operand 0, single buffered']
    %11 = vsyncpa [#allocation3], 0
    %12 = vsyncpa [#allocation4], 0
    // Predicated region
    $region2: #{tpu_custom_call.1} parent=1 // pred_check
      _
    $region3: #{tpu_custom_call.1} parent=1 // pred_check_branch
      %14 = sbr.rel (0) target = $region5
    $region4: #{tpu_custom_call.1} parent=1 // pred_region
      _
    $region5: #{tpu_custom_call.1} parent=1 // pred_fallthru
      _
    // Predicated region
    $region6: #{tpu_custom_call.1} parent=1 // pred_check
      _
    $region7: #{tpu_custom_call.1} parent=1 // pred_check_branch
      %16 = sbr.rel (0) target = $region9
    $region8: #{tpu_custom_call.1} parent=1 // pred_region
      _
    $region9: #{tpu_custom_call.1} parent=1 // pred_fallthru
      _
    // Predicated region
    $region10: #{tpu_custom_call.1} parent=1 // pred_check
      _
    $region11: #{tpu_custom_call.1} parent=1 // pred_check_branch
      %18 = sbr.rel (0) target = $region13
    $region12: #{tpu_custom_call.1} parent=1 // pred_region
      %s20 = ssub.s32 8192, 8192
      %21 = vsyncadd [#allocation3], %s20
      %s22 = sshll.u32 [#allocation2], 4
      %s23 = int_to_ptr.vmem [resolvable:$true] %s22
      %28 = dma.hbm_to_vmem [thread:$0]  %s2, 8192, %s23, [#allocation3], 512, 512, 32
    $region13: #{tpu_custom_call.1} parent=1 // pred_fallthru
      _
    // Predicated region
    $region14: #{tpu_custom_call.1} parent=1 // pred_check
      _
    $region15: #{tpu_custom_call.1} parent=1 // pred_check_branch
      %30 = sbr.rel (0) target = $region17
    $region16: #{tpu_custom_call.1} parent=1 // pred_region
      _
    $region17: #{tpu_custom_call.1} parent=1 // pred_fallthru
      _
    // Predicated region
    $region18: #{tpu_custom_call.1} parent=1 // pred_check
      _
    $region19: #{tpu_custom_call.1} parent=1 // pred_check_branch
      %32 = sbr.rel (0) target = $region21
    $region20: #{tpu_custom_call.1} parent=1 // pred_region
      _
    $region21: #{tpu_custom_call.1} parent=1 // pred_fallthru
      _
    // Predicated region
    $region22: #{tpu_custom_call.1} parent=1 // pred_check
      _
    $region23: #{tpu_custom_call.1} parent=1 // pred_check_branch
      %34 = sbr.rel (0) target = $region25
    $region24: #{tpu_custom_call.1} parent=1 // pred_region
      _
    $region25: #{tpu_custom_call.1} parent=1 // pred_fallthru
      _
    // Predicated region
    $region26: #{tpu_custom_call.1} parent=1 // pred_check
      _
    $region27: #{tpu_custom_call.1} parent=1 // pred_check_branch
      %36 = sbr.rel (0) target = $region29
    $region28: #{tpu_custom_call.1} parent=1 // pred_region
      %37 = dma.done [#allocation3], 8192
    $region29: #{tpu_custom_call.1} parent=1 // pred_fallthru
      _
    %v38 = vld [vmem:[%s0] sm:$0xff]
    %v39 = vld [vmem:[%s0 + $0x8] sm:$0xff]
    %v40 = vld [vmem:[%s0 + $0x10] sm:$0xff]
    %v41 = vld [vmem:[%s0 + $0x18] sm:$0xff]
    %v42 = vld [vmem:[%s0 + $0x20] sm:$0xff]
    %v43 = vld [vmem:[%s0 + $0x28] sm:$0xff]
    %v44 = vld [vmem:[%s0 + $0x30] sm:$0xff]
    %v45 = vld [vmem:[%s0 + $0x38] sm:$0xff]
    %v46 = vld [vmem:[%s1] sm:$0x7f]
    %v47 = vld [vmem:[%s1 + $0x8] sm:$0x7f]
    %v48 = vld [vmem:[%s1 + $0x10] sm:$0x7f]
    %v49 = vld [vmem:[%s1 + $0x18] sm:$0x7f]
    %v50 = vld [vmem:[%s3] sm:$0xf]
    %v52 = vlaneseq
    %v53 = vshrl.u32 %v52, 7
    %v54 = vsub.s32 0, %v53
    %v55 = vrot.slane %v50, %v54
    %v56 = vlaneseq
    %v57 = vshrl.u32 %v56, 7
    %v58 = vsub.s32 1, %v57
    %v59 = vrot.slane %v50, %v58
    %v60 = vlaneseq
    %v61 = vshrl.u32 %v60, 7
    %v62 = vsub.s32 2, %v61
    %v63 = vrot.slane %v50, %v62
    %v64 = vlaneseq
    %v65 = vshrl.u32 %v64, 7
    %v66 = vsub.s32 3, %v65
    %v67 = vrot.slane %v50, %v66
    %vm72 = vcmask 56320
    %v74 = vsel %vm72, %v38, 0
    %v77 = vsel %vm72, %v39, 0
    %v80 = vsel %vm72, %v40, 0
    %v83 = vsel %vm72, %v41, 0
    %v86 = vsel %vm72, %v42, 0
    %v89 = vsel %vm72, %v43, 0
    %v92 = vsel %vm72, %v44, 0
    %v95 = vsel %vm72, %v45, 0
    %vm97 = vcmask 1046528
    %v99 = vsel %vm97, %v46, 0
    %v102 = vsel %vm97, %v47, 0
    %v105 = vsel %vm97, %v48, 0
    %v108 = vsel %vm97, %v49, 0
    %110 = vmatprep.subr.mxu0 %v102
    %111 = vmatpush1.msra.mxu0 %v99
    %112 = vmatprep.subr.mxu0 0.0
    %113 = vmatpush1.msra.mxu0 0.0
    %114 = vmatprep.subr.mxu0 0.0
    %115 = vmatpush1.msra.mxu0 0.0
    %116 = vmatprep.subr.mxu0 0.0
    %117 = vmatpush1.msra.mxu0 0.0
    %118 = vmatprep.subr.mxu0 0.0
    %119 = vmatpush1.msra.mxu0 0.0
    %120 = vmatprep.subr.mxu0 0.0
    %121 = vmatpush1.msra.mxu0 0.0
    %122 = vmatprep.subr.mxu0 0.0
    %123 = vmatpush1.msra.mxu0 0.0
    %124 = vmatprep.subr.mxu0 0.0
    %125 = vmatpush1.msra.mxu0 0.0
    %126 = vmatprep.subr.mxu0 0.0
    %127 = vmatpush1.msra.mxu0 0.0
    %128 = vmatprep.subr.mxu0 0.0
    %129 = vmatpush1.msra.mxu0 0.0
    %130 = vmatprep.subr.mxu0 0.0
    %131 = vmatpush1.msra.mxu0 0.0
    %132 = vmatprep.subr.mxu0 0.0
    %133 = vmatpush1.msra.mxu0 0.0
    %134 = vmatprep.subr.mxu0 0.0
    %135 = vmatpush1.msra.mxu0 0.0
    %136 = vmatprep.subr.mxu0 0.0
    %137 = vmatpush1.msra.mxu0 0.0
    %138 = vmatprep.subr.mxu0 0.0
    %139 = vmatpush1.msra.mxu0 0.0
    %140 = vmatprep.subr.mxu0 0.0
    %141 = vmatpush1.msra.mxu0 0.0
    %142 = vmatprep.subr.mxu0 0.0
    %143 = vmatpush1.msra.mxu0 0.0
    %144 = vmatprep.subr.mxu0 0.0
    %145 = vmatpush1.msra.mxu0 0.0
    %146 = vmatprep.subr.mxu0 0.0
    %147 = vmatpush1.msra.mxu0 0.0
    %148 = vmatprep.subr.mxu0 0.0
    %149 = vmatpush1.msra.mxu0 0.0
    %150 = vmatprep.subr.mxu0 0.0
    %151 = vmatpush1.msra.mxu0 0.0
    %152 = vmatprep.subr.mxu0 0.0
    %153 = vmatpush1.msra.mxu0 0.0
    %154 = vmatprep.subr.mxu0 0.0
    %155 = vmatpush1.msra.mxu0 0.0
    %156 = vmatprep.subr.mxu0 0.0
    %157 = vmatpush1.msra.mxu0 0.0
    %158 = vmatprep.subr.mxu0 0.0
    %159 = vmatpush1.msra.mxu0 0.0
    %160 = vmatprep.subr.mxu0 0.0
    %161 = vmatpush1.msra.mxu0 0.0
    %162 = vmatprep.subr.mxu0 0.0
    %163 = vmatpush1.msra.mxu0 0.0
    %164 = vmatprep.subr.mxu0 0.0
    %165 = vmatpush1.msra.mxu0 0.0
    %166 = vmatprep.subr.mxu0 0.0
    %167 = vmatpush1.msra.mxu0 0.0
    %168 = vmatprep.subr.mxu0 0.0
    %169 = vmatpush1.msra.mxu0 0.0
    %170 = vmatprep.subr.mxu0 0.0
    %171 = vmatpush1.msra.mxu0 0.0
    %172 = vmatprep.subr.mxu0 0.0
    %173 = vmatpush1.msra.mxu0 0.0
    %174 = vmatprep.mubr.f32.mxu0 0.0
    %175 = vmatmul.mubr.f32.gmra.mrb[0].mxu0 %v74
    %v176 = vpop.f32.mrb[0].mxu0
    %v177 = vadd.f32 %v55, %v176
    %v178 = vpop.f32.mrb[0].mxu0
    %v179 = vadd.f32 %v59, %v178
    %180 = vmatprep.mubr.f32.mxu0 0.0
    %181 = vmatmul.mubr.f32.gmra.mrb[0].mxu0 %v77
    %v182 = vpop.f32.mrb[0].mxu0
    %v183 = vadd.f32 %v55, %v182
    %v184 = vpop.f32.mrb[0].mxu0
    %v185 = vadd.f32 %v59, %v184
    %186 = vmatprep.mubr.f32.mxu0 0.0
    %187 = vmatmul.mubr.f32.gmra.mrb[0].mxu0 %v80
    %v188 = vpop.f32.mrb[0].mxu0
    %v189 = vadd.f32 %v55, %v188
    %v190 = vpop.f32.mrb[0].mxu0
    %v191 = vadd.f32 %v59, %v190
    %192 = vmatprep.mubr.f32.mxu0 0.0
    %193 = vmatmul.mubr.f32.gmra.mrb[0].mxu0 %v83
    %v194 = vpop.f32.mrb[0].mxu0
    %v195 = vadd.f32 %v55, %v194
    %v196 = vpop.f32.mrb[0].mxu0
    %v197 = vadd.f32 %v59, %v196
    %198 = vmatprep.mubr.f32.mxu0 0.0
    %199 = vmatmul.mubr.f32.gmra.mrb[0].mxu0 %v86
    %v200 = vpop.f32.mrb[0].mxu0
    %v201 = vadd.f32 %v55, %v200
    %v202 = vpop.f32.mrb[0].mxu0
    %v203 = vadd.f32 %v59, %v202
    %204 = vmatprep.mubr.f32.mxu0 0.0
    %205 = vmatmul.mubr.f32.gmra.mrb[0].mxu0 %v89
    %v206 = vpop.f32.mrb[0].mxu0
    %v207 = vadd.f32 %v55, %v206
    %v208 = vpop.f32.mrb[0].mxu0
    %v209 = vadd.f32 %v59, %v208
    %210 = vmatprep.mubr.f32.mxu0 0.0
    %211 = vmatmul.mubr.f32.gmra.mrb[0].mxu0 %v92
    %v212 = vpop.f32.mrb[0].mxu0
    %v213 = vadd.f32 %v55, %v212
    %v214 = vpop.f32.mrb[0].mxu0
    %v215 = vadd.f32 %v59, %v214
    %216 = vmatprep.mubr.f32.mxu0 0.0
    %217 = vmatmul.mubr.f32.gmra.mrb[0].mxu0 %v95
    %v218 = vpop.f32.mrb[0].mxu0
    %v219 = vadd.f32 %v55, %v218
    %v220 = vpop.f32.mrb[0].mxu0
    %v221 = vadd.f32 %v59, %v220
    %222 = vdwg.mxu0
    %223 = vmatprep.subr.mxu0 %v108
    %224 = vmatpush1.msra.mxu0 %v105
    %225 = vmatprep.subr.mxu0 0.0
    %226 = vmatpush1.msra.mxu0 0.0
    %227 = vmatprep.subr.mxu0 0.0
    %228 = vmatpush1.msra.mxu0 0.0
    %229 = vmatprep.subr.mxu0 0.0
    %230 = vmatpush1.msra.mxu0 0.0
    %231 = vmatprep.subr.mxu0 0.0
    %232 = vmatpush1.msra.mxu0 0.0
    %233 = vmatprep.subr.mxu0 0.0
    %234 = vmatpush1.msra.mxu0 0.0
    %235 = vmatprep.subr.mxu0 0.0
    %236 = vmatpush1.msra.mxu0 0.0
    %237 = vmatprep.subr.mxu0 0.0
    %238 = vmatpush1.msra.mxu0 0.0
    %239 = vmatprep.subr.mxu0 0.0
    %240 = vmatpush1.msra.mxu0 0.0
    %241 = vmatprep.subr.mxu0 0.0
    %242 = vmatpush1.msra.mxu0 0.0
    %243 = vmatprep.subr.mxu0 0.0
    %244 = vmatpush1.msra.mxu0 0.0
    %245 = vmatprep.subr.mxu0 0.0
    %246 = vmatpush1.msra.mxu0 0.0
    %247 = vmatprep.subr.mxu0 0.0
    %248 = vmatpush1.msra.mxu0 0.0
    %249 = vmatprep.subr.mxu0 0.0
    %250 = vmatpush1.msra.mxu0 0.0
    %251 = vmatprep.subr.mxu0 0.0
    %252 = vmatpush1.msra.mxu0 0.0
    %253 = vmatprep.subr.mxu0 0.0
    %254 = vmatpush1.msra.mxu0 0.0
    %255 = vmatprep.subr.mxu0 0.0
    %256 = vmatpush1.msra.mxu0 0.0
    %257 = vmatprep.subr.mxu0 0.0
    %258 = vmatpush1.msra.mxu0 0.0
    %259 = vmatprep.subr.mxu0 0.0
    %260 = vmatpush1.msra.mxu0 0.0
    %261 = vmatprep.subr.mxu0 0.0
    %262 = vmatpush1.msra.mxu0 0.0
    %263 = vmatprep.subr.mxu0 0.0
    %264 = vmatpush1.msra.mxu0 0.0
    %265 = vmatprep.subr.mxu0 0.0
    %266 = vmatpush1.msra.mxu0 0.0
    %267 = vmatprep.subr.mxu0 0.0
    %268 = vmatpush1.msra.mxu0 0.0
    %269 = vmatprep.subr.mxu0 0.0
    %270 = vmatpush1.msra.mxu0 0.0
    %271 = vmatprep.subr.mxu0 0.0
    %272 = vmatpush1.msra.mxu0 0.0
    %273 = vmatprep.subr.mxu0 0.0
    %274 = vmatpush1.msra.mxu0 0.0
    %275 = vmatprep.subr.mxu0 0.0
    %276 = vmatpush1.msra.mxu0 0.0
    %277 = vmatprep.subr.mxu0 0.0
    %278 = vmatpush1.msra.mxu0 0.0
    %279 = vmatprep.subr.mxu0 0.0
    %280 = vmatpush1.msra.mxu0 0.0
    %281 = vmatprep.subr.mxu0 0.0
    %282 = vmatpush1.msra.mxu0 0.0
    %283 = vmatprep.subr.mxu0 0.0
    %284 = vmatpush1.msra.mxu0 0.0
    %285 = vmatprep.subr.mxu0 0.0
    %286 = vmatpush1.msra.mxu0 0.0
    %287 = vmatprep.mubr.f32.mxu0 0.0
    %288 = vmatmul.mubr.f32.gmra.mrb[0].mxu0 %v74
    %v289 = vpop.f32.mrb[0].mxu0
    %v290 = vadd.f32 %v63, %v289
    %v291 = vpop.f32.mrb[0].mxu0
    %v292 = vadd.f32 %v67, %v291
    %293 = vmatprep.mubr.f32.mxu0 0.0
    %294 = vmatmul.mubr.f32.gmra.mrb[0].mxu0 %v77
    %v295 = vpop.f32.mrb[0].mxu0
    %v296 = vadd.f32 %v63, %v295
    %v297 = vpop.f32.mrb[0].mxu0
    %v298 = vadd.f32 %v67, %v297
    %299 = vmatprep.mubr.f32.mxu0 0.0
    %300 = vmatmul.mubr.f32.gmra.mrb[0].mxu0 %v80
    %v301 = vpop.f32.mrb[0].mxu0
    %v302 = vadd.f32 %v63, %v301
    %v303 = vpop.f32.mrb[0].mxu0
    %v304 = vadd.f32 %v67, %v303
    %305 = vmatprep.mubr.f32.mxu0 0.0
    %306 = vmatmul.mubr.f32.gmra.mrb[0].mxu0 %v83
    %v307 = vpop.f32.mrb[0].mxu0
    %v308 = vadd.f32 %v63, %v307
    %v309 = vpop.f32.mrb[0].mxu0
    %v310 = vadd.f32 %v67, %v309
    %311 = vmatprep.mubr.f32.mxu0 0.0
    %312 = vmatmul.mubr.f32.gmra.mrb[0].mxu0 %v86
    %v313 = vpop.f32.mrb[0].mxu0
    %v314 = vadd.f32 %v63, %v313
    %v315 = vpop.f32.mrb[0].mxu0
    %v316 = vadd.f32 %v67, %v315
    %317 = vmatprep.mubr.f32.mxu0 0.0
    %318 = vmatmul.mubr.f32.gmra.mrb[0].mxu0 %v89
    %v319 = vpop.f32.mrb[0].mxu0
    %v320 = vadd.f32 %v63, %v319
    %v321 = vpop.f32.mrb[0].mxu0
    %v322 = vadd.f32 %v67, %v321
    %323 = vmatprep.mubr.f32.mxu0 0.0
    %324 = vmatmul.mubr.f32.gmra.mrb[0].mxu0 %v92
    %v325 = vpop.f32.mrb[0].mxu0
    %v326 = vadd.f32 %v63, %v325
    %v327 = vpop.f32.mrb[0].mxu0
    %v328 = vadd.f32 %v67, %v327
    %329 = vmatprep.mubr.f32.mxu0 0.0
    %330 = vmatmul.mubr.f32.gmra.mrb[0].mxu0 %v95
    %v331 = vpop.f32.mrb[0].mxu0
    %v332 = vadd.f32 %v63, %v331
    %v333 = vpop.f32.mrb[0].mxu0
    %v334 = vadd.f32 %v67, %v333
    %335 = vdwg.mxu0
    %v336 = vld [vmem:[#allocation2] sm:$0xff]
    %v337 = vld [vmem:[#allocation2 + $0x8] sm:$0xff]
    %v338 = vld [vmem:[#allocation2 + $0x10] sm:$0xff]
    %v339 = vld [vmem:[#allocation2 + $0x18] sm:$0xff]
    %v340 = vld [vmem:[#allocation2 + $0x20] sm:$0xff]
    %v341 = vld [vmem:[#allocation2 + $0x28] sm:$0xff]
    %v342 = vld [vmem:[#allocation2 + $0x30] sm:$0xff]
    %v343 = vld [vmem:[#allocation2 + $0x38] sm:$0xff]
    %v344 = vld [vmem:[#allocation2 + $0x40] sm:$0xff]
    %v345 = vld [vmem:[#allocation2 + $0x48] sm:$0xff]
    %v346 = vld [vmem:[#allocation2 + $0x50] sm:$0xff]
    %v347 = vld [vmem:[#allocation2 + $0x58] sm:$0xff]
    %v348 = vld [vmem:[#allocation2 + $0x60] sm:$0xff]
    %v349 = vld [vmem:[#allocation2 + $0x68] sm:$0xff]
    %v350 = vld [vmem:[#allocation2 + $0x70] sm:$0xff]
    %v351 = vld [vmem:[#allocation2 + $0x78] sm:$0xff]
    %v352 = vld [vmem:[#allocation2 + $0x80] sm:$0xff]
    %v353 = vld [vmem:[#allocation2 + $0x88] sm:$0xff]
    %v354 = vld [vmem:[#allocation2 + $0x90] sm:$0xff]
    %v355 = vld [vmem:[#allocation2 + $0x98] sm:$0xff]
    %v356 = vld [vmem:[#allocation2 + $0xa0] sm:$0xff]
    %v357 = vld [vmem:[#allocation2 + $0xa8] sm:$0xff]
    %v358 = vld [vmem:[#allocation2 + $0xb0] sm:$0xff]
    %v359 = vld [vmem:[#allocation2 + $0xb8] sm:$0xff]
    %v360 = vld [vmem:[#allocation2 + $0xc0] sm:$0xff]
    %v361 = vld [vmem:[#allocation2 + $0xc8] sm:$0xff]
    %v362 = vld [vmem:[#allocation2 + $0xd0] sm:$0xff]
    %v363 = vld [vmem:[#allocation2 + $0xd8] sm:$0xff]
    %v364 = vld [vmem:[#allocation2 + $0xe0] sm:$0xff]
    %v365 = vld [vmem:[#allocation2 + $0xe8] sm:$0xff]
    %v366 = vld [vmem:[#allocation2 + $0xf0] sm:$0xff]
    %v367 = vld [vmem:[#allocation2 + $0xf8] sm:$0xff]
    %v368 = vld [vmem:[#allocation2 + $0x100] sm:$0xff]
    %v369 = vld [vmem:[#allocation2 + $0x108] sm:$0xff]
    %v370 = vld [vmem:[#allocation2 + $0x110] sm:$0xff]
    %v371 = vld [vmem:[#allocation2 + $0x118] sm:$0xff]
    %v372 = vld [vmem:[#allocation2 + $0x120] sm:$0xff]
    %v373 = vld [vmem:[#allocation2 + $0x128] sm:$0xff]
    %v374 = vld [vmem:[#allocation2 + $0x130] sm:$0xff]
    %v375 = vld [vmem:[#allocation2 + $0x138] sm:$0xff]
    %v376 = vld [vmem:[#allocation2 + $0x140] sm:$0xff]
    %v377 = vld [vmem:[#allocation2 + $0x148] sm:$0xff]
    %v378 = vld [vmem:[#allocation2 + $0x150] sm:$0xff]
    %v379 = vld [vmem:[#allocation2 + $0x158] sm:$0xff]
    %v380 = vld [vmem:[#allocation2 + $0x160] sm:$0xff]
    %v381 = vld [vmem:[#allocation2 + $0x168] sm:$0xff]
    %v382 = vld [vmem:[#allocation2 + $0x170] sm:$0xff]
    %v383 = vld [vmem:[#allocation2 + $0x178] sm:$0xff]
    %v384 = vld [vmem:[#allocation2 + $0x180] sm:$0xff]
    %v385 = vld [vmem:[#allocation2 + $0x188] sm:$0xff]
    %v386 = vld [vmem:[#allocation2 + $0x190] sm:$0xff]
    %v387 = vld [vmem:[#allocation2 + $0x198] sm:$0xff]
    %v388 = vld [vmem:[#allocation2 + $0x1a0] sm:$0xff]
    %v389 = vld [vmem:[#allocation2 + $0x1a8] sm:$0xff]
    %v390 = vld [vmem:[#allocation2 + $0x1b0] sm:$0xff]
    %v391 = vld [vmem:[#allocation2 + $0x1b8] sm:$0xff]
    %v392 = vld [vmem:[#allocation2 + $0x1c0] sm:$0xff]
    %v393 = vld [vmem:[#allocation2 + $0x1c8] sm:$0xff]
    %v394 = vld [vmem:[#allocation2 + $0x1d0] sm:$0xff]
    %v395 = vld [vmem:[#allocation2 + $0x1d8] sm:$0xff]
    %v396 = vld [vmem:[#allocation2 + $0x1e0] sm:$0xff]
    %v397 = vld [vmem:[#allocation2 + $0x1e8] sm:$0xff]
    %v398 = vld [vmem:[#allocation2 + $0x1f0] sm:$0xff]
    %v399 = vld [vmem:[#allocation2 + $0x1f8] sm:$0xff]
    %400 = vmatprep.subr.mxu0 %v337
    %401 = vmatpush1.msra.mxu0 %v336
    %402 = vmatprep.subr.mxu0 %v341
    %403 = vmatpush1.msra.mxu0 %v340
    %404 = vmatprep.subr.mxu0 %v345
    %405 = vmatpush1.msra.mxu0 %v344
    %406 = vmatprep.subr.mxu0 %v349
    %407 = vmatpush1.msra.mxu0 %v348
    %408 = vmatprep.subr.mxu0 %v353
    %409 = vmatpush1.msra.mxu0 %v352
    %410 = vmatprep.subr.mxu0 %v357
    %411 = vmatpush1.msra.mxu0 %v356
    %412 = vmatprep.subr.mxu0 %v361
    %413 = vmatpush1.msra.mxu0 %v360
    %414 = vmatprep.subr.mxu0 %v365
    %415 = vmatpush1.msra.mxu0 %v364
    %416 = vmatprep.subr.mxu0 %v369
    %417 = vmatpush1.msra.mxu0 %v368
    %418 = vmatprep.subr.mxu0 %v373
    %419 = vmatpush1.msra.mxu0 %v372
    %420 = vmatprep.subr.mxu0 %v377
    %421 = vmatpush1.msra.mxu0 %v376
    %422 = vmatprep.subr.mxu0 %v381
    %423 = vmatpush1.msra.mxu0 %v380
    %424 = vmatprep.subr.mxu0 %v385
    %425 = vmatpush1.msra.mxu0 %v384
    %426 = vmatprep.subr.mxu0 %v389
    %427 = vmatpush1.msra.mxu0 %v388
    %428 = vmatprep.subr.mxu0 %v393
    %429 = vmatpush1.msra.mxu0 %v392
    %430 = vmatprep.subr.mxu0 %v397
    %431 = vmatpush1.msra.mxu0 %v396
    %432 = vmatprep.subr.mxu0 0.0
    %433 = vmatpush1.msra.mxu0 0.0
    %434 = vmatprep.subr.mxu0 0.0
    %435 = vmatpush1.msra.mxu0 0.0
    %436 = vmatprep.subr.mxu0 0.0
    %437 = vmatpush1.msra.mxu0 0.0
    %438 = vmatprep.subr.mxu0 0.0
    %439 = vmatpush1.msra.mxu0 0.0
    %440 = vmatprep.subr.mxu0 0.0
    %441 = vmatpush1.msra.mxu0 0.0
    %442 = vmatprep.subr.mxu0 0.0
    %443 = vmatpush1.msra.mxu0 0.0
    %444 = vmatprep.subr.mxu0 0.0
    %445 = vmatpush1.msra.mxu0 0.0
    %446 = vmatprep.subr.mxu0 0.0
    %447 = vmatpush1.msra.mxu0 0.0
    %448 = vmatprep.subr.mxu0 0.0
    %449 = vmatpush1.msra.mxu0 0.0
    %450 = vmatprep.subr.mxu0 0.0
    %451 = vmatpush1.msra.mxu0 0.0
    %452 = vmatprep.subr.mxu0 0.0
    %453 = vmatpush1.msra.mxu0 0.0
    %454 = vmatprep.subr.mxu0 0.0
    %455 = vmatpush1.msra.mxu0 0.0
    %456 = vmatprep.subr.mxu0 0.0
    %457 = vmatpush1.msra.mxu0 0.0
    %458 = vmatprep.subr.mxu0 0.0
    %459 = vmatpush1.msra.mxu0 0.0
    %460 = vmatprep.subr.mxu0 0.0
    %461 = vmatpush1.msra.mxu0 0.0
    %462 = vmatprep.subr.mxu0 0.0
    %463 = vmatpush1.msra.mxu0 0.0
    %464 = vmatprep.mubr.f32.mxu0 0.0
    %465 = vmatmul.mubr.f32.gmra.mrb[0].mxu0 0.0
    %v466 = vpop.f32.mrb[0].mxu0
    %v467 = vadd.f32 0.0, %v466
    %v468 = vpop.f32.mrb[0].mxu0
    %v469 = vadd.f32 0.0, %v468
    %470 = vdwg.mxu0
    %471 = vmatprep.subr.mxu0 %v339
    %472 = vmatpush1.msra.mxu0 %v338
    %473 = vmatprep.subr.mxu0 %v343
    %474 = vmatpush1.msra.mxu0 %v342
    %475 = vmatprep.subr.mxu0 %v347
    %476 = vmatpush1.msra.mxu0 %v346
    %477 = vmatprep.subr.mxu0 %v351
    %478 = vmatpush1.msra.mxu0 %v350
    %479 = vmatprep.subr.mxu0 %v355
    %480 = vmatpush1.msra.mxu0 %v354
    %481 = vmatprep.subr.mxu0 %v359
    %482 = vmatpush1.msra.mxu0 %v358
    %483 = vmatprep.subr.mxu0 %v363
    %484 = vmatpush1.msra.mxu0 %v362
    %485 = vmatprep.subr.mxu0 %v367
    %486 = vmatpush1.msra.mxu0 %v366
    %487 = vmatprep.subr.mxu0 %v371
    %488 = vmatpush1.msra.mxu0 %v370
    %489 = vmatprep.subr.mxu0 %v375
    %490 = vmatpush1.msra.mxu0 %v374
    %491 = vmatprep.subr.mxu0 %v379
    %492 = vmatpush1.msra.mxu0 %v378
    %493 = vmatprep.subr.mxu0 %v383
    %494 = vmatpush1.msra.mxu0 %v382
    %495 = vmatprep.subr.mxu0 %v387
    %496 = vmatpush1.msra.mxu0 %v386
    %497 = vmatprep.subr.mxu0 %v391
    %498 = vmatpush1.msra.mxu0 %v390
    %499 = vmatprep.subr.mxu0 %v395
    %500 = vmatpush1.msra.mxu0 %v394
    %501 = vmatprep.subr.mxu0 %v399
    %502 = vmatpush1.msra.mxu0 %v398
    %503 = vmatprep.subr.mxu0 0.0
    %504 = vmatpush1.msra.mxu0 0.0
    %505 = vmatprep.subr.mxu0 0.0
    %506 = vmatpush1.msra.mxu0 0.0
    %507 = vmatprep.subr.mxu0 0.0
    %508 = vmatpush1.msra.mxu0 0.0
    %509 = vmatprep.subr.mxu0 0.0
    %510 = vmatpush1.msra.mxu0 0.0
    %511 = vmatprep.subr.mxu0 0.0
    %512 = vmatpush1.msra.mxu0 0.0
    %513 = vmatprep.subr.mxu0 0.0
    %514 = vmatpush1.msra.mxu0 0.0
    %515 = vmatprep.subr.mxu0 0.0
    %516 = vmatpush1.msra.mxu0 0.0
    %517 = vmatprep.subr.mxu0 0.0
    %518 = vmatpush1.msra.mxu0 0.0
    %519 = vmatprep.subr.mxu0 0.0
    %520 = vmatpush1.msra.mxu0 0.0
    %521 = vmatprep.subr.mxu0 0.0
    %522 = vmatpush1.msra.mxu0 0.0
    %523 = vmatprep.subr.mxu0 0.0
    %524 = vmatpush1.msra.mxu0 0.0
    %525 = vmatprep.subr.mxu0 0.0
    %526 = vmatpush1.msra.mxu0 0.0
    %527 = vmatprep.subr.mxu0 0.0
    %528 = vmatpush1.msra.mxu0 0.0
    %529 = vmatprep.subr.mxu0 0.0
    %530 = vmatpush1.msra.mxu0 0.0
    %531 = vmatprep.subr.mxu0 0.0
    %532 = vmatpush1.msra.mxu0 0.0
    %533 = vmatprep.subr.mxu0 0.0
    %534 = vmatpush1.msra.mxu0 0.0
    %535 = vmatprep.mubr.f32.mxu0 0.0
    %536 = vmatmul.mubr.f32.gmra.mrb[0].mxu0 0.0
    %v537 = vpop.f32.mrb[0].mxu0
    %v538 = vadd.f32 0.0, %v537
    %v539 = vpop.f32.mrb[0].mxu0
    %v540 = vadd.f32 0.0, %v539
    %541 = vdwg.mxu0
    %v542 = vadd.f32 %v177, %v467
    %v543 = vadd.f32 %v179, %v469
    %v544 = vadd.f32 %v290, %v538
    %v545 = vadd.f32 %v292, %v540
    %v546 = vxor.u32 %v542, 2147483648
    %v547 = vmul.f32 %v546, 1.442695
    %v548 = vpow.pop %v547
    %v549 = vadd.f32 %v548, 1.0
    %v550 = vrcp.pop %v549
    %v551 = vmul.f32 1.0, %v550
    %v552 = vxor.u32 %v543, 2147483648
    %v553 = vmul.f32 %v552, 1.442695
    %v554 = vpow.pop %v553
    %v555 = vadd.f32 %v554, 1.0
    %v556 = vrcp.pop %v555
    %v557 = vmul.f32 1.0, %v556
    %v558 = vtanh.pop %v544
    %v559 = vxor.u32 %v545, 2147483648
    %v560 = vmul.f32 %v559, 1.442695
    %v561 = vpow.pop %v560
    %v562 = vadd.f32 %v561, 1.0
    %v563 = vrcp.pop %v562
    %v564 = vmul.f32 1.0, %v563
    %v565 = vmul.f32 %v557, 0.0
    %v566 = vmul.f32 %v551, %v558
    %v567 = vadd.f32 %v565, %v566
    %v568 = vtanh.pop %v567
    %v569 = vmul.f32 %v564, %v568
    %570 = vmatprep.subr.mxu0 %v337
    %571 = vmatpush1.msra.mxu0 %v336
    %572 = vmatprep.subr.mxu0 %v341
    %573 = vmatpush1.msra.mxu0 %v340
    %574 = vmatprep.subr.mxu0 %v345
    %575 = vmatpush1.msra.mxu0 %v344
    %576 = vmatprep.subr.mxu0 %v349
    %577 = vmatpush1.msra.mxu0 %v348
    %578 = vmatprep.subr.mxu0 %v353
    %579 = vmatpush1.msra.mxu0 %v352
    %580 = vmatprep.subr.mxu0 %v357
    %581 = vmatpush1.msra.mxu0 %v356
    %582 = vmatprep.subr.mxu0 %v361
    %583 = vmatpush1.msra.mxu0 %v360
    %584 = vmatprep.subr.mxu0 %v365
    %585 = vmatpush1.msra.mxu0 %v364
    %586 = vmatprep.subr.mxu0 %v369
    %587 = vmatpush1.msra.mxu0 %v368
    %588 = vmatprep.subr.mxu0 %v373
    %589 = vmatpush1.msra.mxu0 %v372
    %590 = vmatprep.subr.mxu0 %v377
    %591 = vmatpush1.msra.mxu0 %v376
    %592 = vmatprep.subr.mxu0 %v381
    %593 = vmatpush1.msra.mxu0 %v380
    %594 = vmatprep.subr.mxu0 %v385
    %595 = vmatpush1.msra.mxu0 %v384
    %596 = vmatprep.subr.mxu0 %v389
    %597 = vmatpush1.msra.mxu0 %v388
    %598 = vmatprep.subr.mxu0 %v393
    %599 = vmatpush1.msra.mxu0 %v392
    %600 = vmatprep.subr.mxu0 %v397
    %601 = vmatpush1.msra.mxu0 %v396
    %602 = vmatprep.subr.mxu0 0.0
    %603 = vmatpush1.msra.mxu0 0.0
    %604 = vmatprep.subr.mxu0 0.0
    %605 = vmatpush1.msra.mxu0 0.0
    %606 = vmatprep.subr.mxu0 0.0
    %607 = vmatpush1.msra.mxu0 0.0
    %608 = vmatprep.subr.mxu0 0.0
    %609 = vmatpush1.msra.mxu0 0.0
    %610 = vmatprep.subr.mxu0 0.0
    %611 = vmatpush1.msra.mxu0 0.0
    %612 = vmatprep.subr.mxu0 0.0
    %613 = vmatpush1.msra.mxu0 0.0
    %614 = vmatprep.subr.mxu0 0.0
    %615 = vmatpush1.msra.mxu0 0.0
    %616 = vmatprep.subr.mxu0 0.0
    %617 = vmatpush1.msra.mxu0 0.0
    %618 = vmatprep.subr.mxu0 0.0
    %619 = vmatpush1.msra.mxu0 0.0
    %620 = vmatprep.subr.mxu0 0.0
    %621 = vmatpush1.msra.mxu0 0.0
    %622 = vmatprep.subr.mxu0 0.0
    %623 = vmatpush1.msra.mxu0 0.0
    %624 = vmatprep.subr.mxu0 0.0
    %625 = vmatpush1.msra.mxu0 0.0
    %626 = vmatprep.subr.mxu0 0.0
    %627 = vmatpush1.msra.mxu0 0.0
    %628 = vmatprep.subr.mxu0 0.0
    %629 = vmatpush1.msra.mxu0 0.0
    %630 = vmatprep.subr.mxu0 0.0
    %631 = vmatpush1.msra.mxu0 0.0
    %632 = vmatprep.subr.mxu0 0.0
    %633 = vmatpush1.msra.mxu0 0.0
    %634 = vmatprep.mubr.f32.mxu0 0.0
    %635 = vmatmul.mubr.f32.gmra.mrb[0].mxu0 %v569
    %v636 = vpop.f32.mrb[0].mxu0
    %v637 = vadd.f32 0.0, %v636
    %v638 = vpop.f32.mrb[0].mxu0
    %v639 = vadd.f32 0.0, %v638
    %640 = vdwg.mxu0
    %641 = vmatprep.subr.mxu0 %v339
    %642 = vmatpush1.msra.mxu0 %v338
    %643 = vmatprep.subr.mxu0 %v343
    %644 = vmatpush1.msra.mxu0 %v342
    %645 = vmatprep.subr.mxu0 %v347
    %646 = vmatpush1.msra.mxu0 %v346
    %647 = vmatprep.subr.mxu0 %v351
    %648 = vmatpush1.msra.mxu0 %v350
    %649 = vmatprep.subr.mxu0 %v355
    %650 = vmatpush1.msra.mxu0 %v354
    %651 = vmatprep.subr.mxu0 %v359
    %652 = vmatpush1.msra.mxu0 %v358
    %653 = vmatprep.subr.mxu0 %v363
    %654 = vmatpush1.msra.mxu0 %v362
    %655 = vmatprep.subr.mxu0 %v367
    %656 = vmatpush1.msra.mxu0 %v366
    %657 = vmatprep.subr.mxu0 %v371
    %658 = vmatpush1.msra.mxu0 %v370
    %659 = vmatprep.subr.mxu0 %v375
    %660 = vmatpush1.msra.mxu0 %v374
    %661 = vmatprep.subr.mxu0 %v379
    %662 = vmatpush1.msra.mxu0 %v378
    %663 = vmatprep.subr.mxu0 %v383
    %664 = vmatpush1.msra.mxu0 %v382
    %665 = vmatprep.subr.mxu0 %v387
    %666 = vmatpush1.msra.mxu0 %v386
    %667 = vmatprep.subr.mxu0 %v391
    %668 = vmatpush1.msra.mxu0 %v390
    %669 = vmatprep.subr.mxu0 %v395
    %670 = vmatpush1.msra.mxu0 %v394
    %671 = vmatprep.subr.mxu0 %v399
    %672 = vmatpush1.msra.mxu0 %v398
    %673 = vmatprep.subr.mxu0 0.0
    %674 = vmatpush1.msra.mxu0 0.0
    %675 = vmatprep.subr.mxu0 0.0
    %676 = vmatpush1.msra.mxu0 0.0
    %677 = vmatprep.subr.mxu0 0.0
    %678 = vmatpush1.msra.mxu0 0.0
    %679 = vmatprep.subr.mxu0 0.0
    %680 = vmatpush1.msra.mxu0 0.0
    %681 = vmatprep.subr.mxu0 0.0
    %682 = vmatpush1.msra.mxu0 0.0
    %683 = vmatprep.subr.mxu0 0.0
    %684 = vmatpush1.msra.mxu0 0.0
    %685 = vmatprep.subr.mxu0 0.0
    %686 = vmatpush1.msra.mxu0 0.0
    %687 = vmatprep.subr.mxu0 0.0
    %688 = vmatpush1.msra.mxu0 0.0
    %689 = vmatprep.subr.mxu0 0.0
    %690 = vmatpush1.msra.mxu0 0.0
    %691 = vmatprep.subr.mxu0 0.0
    %692 = vmatpush1.msra.mxu0 0.0
    %693 = vmatprep.subr.mxu0 0.0
    %694 = vmatpush1.msra.mxu0 0.0
    %695 = vmatprep.subr.mxu0 0.0
    %696 = vmatpush1.msra.mxu0 0.0
    %697 = vmatprep.subr.mxu0 0.0
    %698 = vmatpush1.msra.mxu0 0.0
    %699 = vmatprep.subr.mxu0 0.0
    %700 = vmatpush1.msra.mxu0 0.0
    %701 = vmatprep.subr.mxu0 0.0
    %702 = vmatpush1.msra.mxu0 0.0
    %703 = vmatprep.subr.mxu0 0.0
    %704 = vmatpush1.msra.mxu0 0.0
    %705 = vmatprep.mubr.f32.mxu0 0.0
    %706 = vmatmul.mubr.f32.gmra.mrb[0].mxu0 %v569
    %v707 = vpop.f32.mrb[0].mxu0
    %v708 = vadd.f32 0.0, %v707
    %v709 = vpop.f32.mrb[0].mxu0
    %v710 = vadd.f32 0.0, %v709
    %711 = vdwg.mxu0
    %v712 = vadd.f32 %v183, %v637
    %v713 = vadd.f32 %v185, %v639
    %v714 = vadd.f32 %v296, %v708
    %v715 = vadd.f32 %v298, %v710
    %v716 = vxor.u32 %v712, 2147483648
    %v717 = vmul.f32 %v716, 1.442695
    %v718 = vpow.pop %v717
    %v719 = vadd.f32 %v718, 1.0
    %v720 = vrcp.pop %v719
    %v721 = vmul.f32 1.0, %v720
    %v722 = vxor.u32 %v713, 2147483648
    %v723 = vmul.f32 %v722, 1.442695
    %v724 = vpow.pop %v723
    %v725 = vadd.f32 %v724, 1.0
    %v726 = vrcp.pop %v725
    %v727 = vmul.f32 1.0, %v726
    %v728 = vtanh.pop %v714
    %v729 = vxor.u32 %v715, 2147483648
    %v730 = vmul.f32 %v729, 1.442695
    %v731 = vpow.pop %v730
    %v732 = vadd.f32 %v731, 1.0
    %v733 = vrcp.pop %v732
    %v734 = vmul.f32 1.0, %v733
    %v735 = vmul.f32 %v727, %v567
    %v736 = vmul.f32 %v721, %v728
    %v737 = vadd.f32 %v735, %v736
    %v738 = vtanh.pop %v737
    %v739 = vmul.f32 %v734, %v738
    %740 = vmatprep.subr.mxu0 %v337
    %741 = vmatpush1.msra.mxu0 %v336
    %742 = vmatprep.subr.mxu0 %v341
    %743 = vmatpush1.msra.mxu0 %v340
    %744 = vmatprep.subr.mxu0 %v345
    %745 = vmatpush1.msra.mxu0 %v344
    %746 = vmatprep.subr.mxu0 %v349
    %747 = vmatpush1.msra.mxu0 %v348
    %748 = vmatprep.subr.mxu0 %v353
    %749 = vmatpush1.msra.mxu0 %v352
    %750 = vmatprep.subr.mxu0 %v357
    %751 = vmatpush1.msra.mxu0 %v356
    %752 = vmatprep.subr.mxu0 %v361
    %753 = vmatpush1.msra.mxu0 %v360
    %754 = vmatprep.subr.mxu0 %v365
    %755 = vmatpush1.msra.mxu0 %v364
    %756 = vmatprep.subr.mxu0 %v369
    %757 = vmatpush1.msra.mxu0 %v368
    %758 = vmatprep.subr.mxu0 %v373
    %759 = vmatpush1.msra.mxu0 %v372
    %760 = vmatprep.subr.mxu0 %v377
    %761 = vmatpush1.msra.mxu0 %v376
    %762 = vmatprep.subr.mxu0 %v381
    %763 = vmatpush1.msra.mxu0 %v380
    %764 = vmatprep.subr.mxu0 %v385
    %765 = vmatpush1.msra.mxu0 %v384
    %766 = vmatprep.subr.mxu0 %v389
    %767 = vmatpush1.msra.mxu0 %v388
    %768 = vmatprep.subr.mxu0 %v393
    %769 = vmatpush1.msra.mxu0 %v392
    %770 = vmatprep.subr.mxu0 %v397
    %771 = vmatpush1.msra.mxu0 %v396
    %772 = vmatprep.subr.mxu0 0.0
    %773 = vmatpush1.msra.mxu0 0.0
    %774 = vmatprep.subr.mxu0 0.0
    %775 = vmatpush1.msra.mxu0 0.0
    %776 = vmatprep.subr.mxu0 0.0
    %777 = vmatpush1.msra.mxu0 0.0
    %778 = vmatprep.subr.mxu0 0.0
    %779 = vmatpush1.msra.mxu0 0.0
    %780 = vmatprep.subr.mxu0 0.0
    %781 = vmatpush1.msra.mxu0 0.0
    %782 = vmatprep.subr.mxu0 0.0
    %783 = vmatpush1.msra.mxu0 0.0
    %784 = vmatprep.subr.mxu0 0.0
    %785 = vmatpush1.msra.mxu0 0.0
    %786 = vmatprep.subr.mxu0 0.0
    %787 = vmatpush1.msra.mxu0 0.0
    %788 = vmatprep.subr.mxu0 0.0
    %789 = vmatpush1.msra.mxu0 0.0
    %790 = vmatprep.subr.mxu0 0.0
    %791 = vmatpush1.msra.mxu0 0.0
    %792 = vmatprep.subr.mxu0 0.0
    %793 = vmatpush1.msra.mxu0 0.0
    %794 = vmatprep.subr.mxu0 0.0
    %795 = vmatpush1.msra.mxu0 0.0
    %796 = vmatprep.subr.mxu0 0.0
    %797 = vmatpush1.msra.mxu0 0.0
    %798 = vmatprep.subr.mxu0 0.0
    %799 = vmatpush1.msra.mxu0 0.0
    %800 = vmatprep.subr.mxu0 0.0
    %801 = vmatpush1.msra.mxu0 0.0
    %802 = vmatprep.subr.mxu0 0.0
    %803 = vmatpush1.msra.mxu0 0.0
    %804 = vmatprep.mubr.f32.mxu0 0.0
    %805 = vmatmul.mubr.f32.gmra.mrb[0].mxu0 %v739
    %v806 = vpop.f32.mrb[0].mxu0
    %v807 = vadd.f32 0.0, %v806
    %v808 = vpop.f32.mrb[0].mxu0
    %v809 = vadd.f32 0.0, %v808
    %810 = vdwg.mxu0
    %811 = vmatprep.subr.mxu0 %v339
    %812 = vmatpush1.msra.mxu0 %v338
    %813 = vmatprep.subr.mxu0 %v343
    %814 = vmatpush1.msra.mxu0 %v342
    %815 = vmatprep.subr.mxu0 %v347
    %816 = vmatpush1.msra.mxu0 %v346
    %817 = vmatprep.subr.mxu0 %v351
    %818 = vmatpush1.msra.mxu0 %v350
    %819 = vmatprep.subr.mxu0 %v355
    %820 = vmatpush1.msra.mxu0 %v354
    %821 = vmatprep.subr.mxu0 %v359
    %822 = vmatpush1.msra.mxu0 %v358
    %823 = vmatprep.subr.mxu0 %v363
    %824 = vmatpush1.msra.mxu0 %v362
    %825 = vmatprep.subr.mxu0 %v367
    %826 = vmatpush1.msra.mxu0 %v366
    %827 = vmatprep.subr.mxu0 %v371
    %828 = vmatpush1.msra.mxu0 %v370
    %829 = vmatprep.subr.mxu0 %v375
    %830 = vmatpush1.msra.mxu0 %v374
    %831 = vmatprep.subr.mxu0 %v379
    %832 = vmatpush1.msra.mxu0 %v378
    %833 = vmatprep.subr.mxu0 %v383
    %834 = vmatpush1.msra.mxu0 %v382
    %835 = vmatprep.subr.mxu0 %v387
    %836 = vmatpush1.msra.mxu0 %v386
    %837 = vmatprep.subr.mxu0 %v391
    %838 = vmatpush1.msra.mxu0 %v390
    %839 = vmatprep.subr.mxu0 %v395
    %840 = vmatpush1.msra.mxu0 %v394
    %841 = vmatprep.subr.mxu0 %v399
    %842 = vmatpush1.msra.mxu0 %v398
    %843 = vmatprep.subr.mxu0 0.0
    %844 = vmatpush1.msra.mxu0 0.0
    %845 = vmatprep.subr.mxu0 0.0
    %846 = vmatpush1.msra.mxu0 0.0
    %847 = vmatprep.subr.mxu0 0.0
    %848 = vmatpush1.msra.mxu0 0.0
    %849 = vmatprep.subr.mxu0 0.0
    %850 = vmatpush1.msra.mxu0 0.0
    %851 = vmatprep.subr.mxu0 0.0
    %852 = vmatpush1.msra.mxu0 0.0
    %853 = vmatprep.subr.mxu0 0.0
    %854 = vmatpush1.msra.mxu0 0.0
    %855 = vmatprep.subr.mxu0 0.0
    %856 = vmatpush1.msra.mxu0 0.0
    %857 = vmatprep.subr.mxu0 0.0
    %858 = vmatpush1.msra.mxu0 0.0
    %859 = vmatprep.subr.mxu0 0.0
    %860 = vmatpush1.msra.mxu0 0.0
    %861 = vmatprep.subr.mxu0 0.0
    %862 = vmatpush1.msra.mxu0 0.0
    %863 = vmatprep.subr.mxu0 0.0
    %864 = vmatpush1.msra.mxu0 0.0
    %865 = vmatprep.subr.mxu0 0.0
    %866 = vmatpush1.msra.mxu0 0.0
    %867 = vmatprep.subr.mxu0 0.0
    %868 = vmatpush1.msra.mxu0 0.0
    %869 = vmatprep.subr.mxu0 0.0
    %870 = vmatpush1.msra.mxu0 0.0
    %871 = vmatprep.subr.mxu0 0.0
    %872 = vmatpush1.msra.mxu0 0.0
    %873 = vmatprep.subr.mxu0 0.0
    %874 = vmatpush1.msra.mxu0 0.0
    %875 = vmatprep.mubr.f32.mxu0 0.0
    %876 = vmatmul.mubr.f32.gmra.mrb[0].mxu0 %v739
    %v877 = vpop.f32.mrb[0].mxu0
    %v878 = vadd.f32 0.0, %v877
    %v879 = vpop.f32.mrb[0].mxu0
    %v880 = vadd.f32 0.0, %v879
    %881 = vdwg.mxu0
    %v882 = vadd.f32 %v189, %v807
    %v883 = vadd.f32 %v191, %v809
    %v884 = vadd.f32 %v302, %v878
    %v885 = vadd.f32 %v304, %v880
    %v886 = vxor.u32 %v882, 2147483648
    %v887 = vmul.f32 %v886, 1.442695
    %v888 = vpow.pop %v887
    %v889 = vadd.f32 %v888, 1.0
    %v890 = vrcp.pop %v889
    %v891 = vmul.f32 1.0, %v890
    %v892 = vxor.u32 %v883, 2147483648
    %v893 = vmul.f32 %v892, 1.442695
    %v894 = vpow.pop %v893
    %v895 = vadd.f32 %v894, 1.0
    %v896 = vrcp.pop %v895
    %v897 = vmul.f32 1.0, %v896
    %v898 = vtanh.pop %v884
    %v899 = vxor.u32 %v885, 2147483648
    %v900 = vmul.f32 %v899, 1.442695
    %v901 = vpow.pop %v900
    %v902 = vadd.f32 %v901, 1.0
    %v903 = vrcp.pop %v902
    %v904 = vmul.f32 1.0, %v903
    %v905 = vmul.f32 %v897, %v737
    %v906 = vmul.f32 %v891, %v898
    %v907 = vadd.f32 %v905, %v906
    %v908 = vtanh.pop %v907
    %v909 = vmul.f32 %v904, %v908
    %910 = vmatprep.subr.mxu0 %v337
    %911 = vmatpush1.msra.mxu0 %v336
    %912 = vmatprep.subr.mxu0 %v341
    %913 = vmatpush1.msra.mxu0 %v340
    %914 = vmatprep.subr.mxu0 %v345
    %915 = vmatpush1.msra.mxu0 %v344
    %916 = vmatprep.subr.mxu0 %v349
    %917 = vmatpush1.msra.mxu0 %v348
    %918 = vmatprep.subr.mxu0 %v353
    %919 = vmatpush1.msra.mxu0 %v352
    %920 = vmatprep.subr.mxu0 %v357
    %921 = vmatpush1.msra.mxu0 %v356
    %922 = vmatprep.subr.mxu0 %v361
    %923 = vmatpush1.msra.mxu0 %v360
    %924 = vmatprep.subr.mxu0 %v365
    %925 = vmatpush1.msra.mxu0 %v364
    %926 = vmatprep.subr.mxu0 %v369
    %927 = vmatpush1.msra.mxu0 %v368
    %928 = vmatprep.subr.mxu0 %v373
    %929 = vmatpush1.msra.mxu0 %v372
    %930 = vmatprep.subr.mxu0 %v377
    %931 = vmatpush1.msra.mxu0 %v376
    %932 = vmatprep.subr.mxu0 %v381
    %933 = vmatpush1.msra.mxu0 %v380
    %934 = vmatprep.subr.mxu0 %v385
    %935 = vmatpush1.msra.mxu0 %v384
    %936 = vmatprep.subr.mxu0 %v389
    %937 = vmatpush1.msra.mxu0 %v388
    %938 = vmatprep.subr.mxu0 %v393
    %939 = vmatpush1.msra.mxu0 %v392
    %940 = vmatprep.subr.mxu0 %v397
    %941 = vmatpush1.msra.mxu0 %v396
    %942 = vmatprep.subr.mxu0 0.0
    %943 = vmatpush1.msra.mxu0 0.0
    %944 = vmatprep.subr.mxu0 0.0
    %945 = vmatpush1.msra.mxu0 0.0
    %946 = vmatprep.subr.mxu0 0.0
    %947 = vmatpush1.msra.mxu0 0.0
    %948 = vmatprep.subr.mxu0 0.0
    %949 = vmatpush1.msra.mxu0 0.0
    %950 = vmatprep.subr.mxu0 0.0
    %951 = vmatpush1.msra.mxu0 0.0
    %952 = vmatprep.subr.mxu0 0.0
    %953 = vmatpush1.msra.mxu0 0.0
    %954 = vmatprep.subr.mxu0 0.0
    %955 = vmatpush1.msra.mxu0 0.0
    %956 = vmatprep.subr.mxu0 0.0
    %957 = vmatpush1.msra.mxu0 0.0
    %958 = vmatprep.subr.mxu0 0.0
    %959 = vmatpush1.msra.mxu0 0.0
    %960 = vmatprep.subr.mxu0 0.0
    %961 = vmatpush1.msra.mxu0 0.0
    %962 = vmatprep.subr.mxu0 0.0
    %963 = vmatpush1.msra.mxu0 0.0
    %964 = vmatprep.subr.mxu0 0.0
    %965 = vmatpush1.msra.mxu0 0.0
    %966 = vmatprep.subr.mxu0 0.0
    %967 = vmatpush1.msra.mxu0 0.0
    %968 = vmatprep.subr.mxu0 0.0
    %969 = vmatpush1.msra.mxu0 0.0
    %970 = vmatprep.subr.mxu0 0.0
    %971 = vmatpush1.msra.mxu0 0.0
    %972 = vmatprep.subr.mxu0 0.0
    %973 = vmatpush1.msra.mxu0 0.0
    %974 = vmatprep.mubr.f32.mxu0 0.0
    %975 = vmatmul.mubr.f32.gmra.mrb[0].mxu0 %v909
    %v976 = vpop.f32.mrb[0].mxu0
    %v977 = vadd.f32 0.0, %v976
    %v978 = vpop.f32.mrb[0].mxu0
    %v979 = vadd.f32 0.0, %v978
    %980 = vdwg.mxu0
    %981 = vmatprep.subr.mxu0 %v339
    %982 = vmatpush1.msra.mxu0 %v338
    %983 = vmatprep.subr.mxu0 %v343
    %984 = vmatpush1.msra.mxu0 %v342
    %985 = vmatprep.subr.mxu0 %v347
    %986 = vmatpush1.msra.mxu0 %v346
    %987 = vmatprep.subr.mxu0 %v351
    %988 = vmatpush1.msra.mxu0 %v350
    %989 = vmatprep.subr.mxu0 %v355
    %990 = vmatpush1.msra.mxu0 %v354
    %991 = vmatprep.subr.mxu0 %v359
    %992 = vmatpush1.msra.mxu0 %v358
    %993 = vmatprep.subr.mxu0 %v363
    %994 = vmatpush1.msra.mxu0 %v362
    %995 = vmatprep.subr.mxu0 %v367
    %996 = vmatpush1.msra.mxu0 %v366
    %997 = vmatprep.subr.mxu0 %v371
    %998 = vmatpush1.msra.mxu0 %v370
    %999 = vmatprep.subr.mxu0 %v375
    %1000 = vmatpush1.msra.mxu0 %v374
    %1001 = vmatprep.subr.mxu0 %v379
    %1002 = vmatpush1.msra.mxu0 %v378
    %1003 = vmatprep.subr.mxu0 %v383
    %1004 = vmatpush1.msra.mxu0 %v382
    %1005 = vmatprep.subr.mxu0 %v387
    %1006 = vmatpush1.msra.mxu0 %v386
    %1007 = vmatprep.subr.mxu0 %v391
    %1008 = vmatpush1.msra.mxu0 %v390
    %1009 = vmatprep.subr.mxu0 %v395
    %1010 = vmatpush1.msra.mxu0 %v394
    %1011 = vmatprep.subr.mxu0 %v399
    %1012 = vmatpush1.msra.mxu0 %v398
    %1013 = vmatprep.subr.mxu0 0.0
    %1014 = vmatpush1.msra.mxu0 0.0
    %1015 = vmatprep.subr.mxu0 0.0
    %1016 = vmatpush1.msra.mxu0 0.0
    %1017 = vmatprep.subr.mxu0 0.0
    %1018 = vmatpush1.msra.mxu0 0.0
    %1019 = vmatprep.subr.mxu0 0.0
    %1020 = vmatpush1.msra.mxu0 0.0
    %1021 = vmatprep.subr.mxu0 0.0
    %1022 = vmatpush1.msra.mxu0 0.0
    %1023 = vmatprep.subr.mxu0 0.0
    %1024 = vmatpush1.msra.mxu0 0.0
    %1025 = vmatprep.subr.mxu0 0.0
    %1026 = vmatpush1.msra.mxu0 0.0
    %1027 = vmatprep.subr.mxu0 0.0
    %1028 = vmatpush1.msra.mxu0 0.0
    %1029 = vmatprep.subr.mxu0 0.0
    %1030 = vmatpush1.msra.mxu0 0.0
    %1031 = vmatprep.subr.mxu0 0.0
    %1032 = vmatpush1.msra.mxu0 0.0
    %1033 = vmatprep.subr.mxu0 0.0
    %1034 = vmatpush1.msra.mxu0 0.0
    %1035 = vmatprep.subr.mxu0 0.0
    %1036 = vmatpush1.msra.mxu0 0.0
    %1037 = vmatprep.subr.mxu0 0.0
    %1038 = vmatpush1.msra.mxu0 0.0
    %1039 = vmatprep.subr.mxu0 0.0
    %1040 = vmatpush1.msra.mxu0 0.0
    %1041 = vmatprep.subr.mxu0 0.0
    %1042 = vmatpush1.msra.mxu0 0.0
    %1043 = vmatprep.subr.mxu0 0.0
    %1044 = vmatpush1.msra.mxu0 0.0
    %1045 = vmatprep.mubr.f32.mxu0 0.0
    %1046 = vmatmul.mubr.f32.gmra.mrb[0].mxu0 %v909
    %v1047 = vpop.f32.mrb[0].mxu0
    %v1048 = vadd.f32 0.0, %v1047
    %v1049 = vpop.f32.mrb[0].mxu0
    %v1050 = vadd.f32 0.0, %v1049
    %1051 = vdwg.mxu0
    %v1052 = vadd.f32 %v195, %v977
    %v1053 = vadd.f32 %v197, %v979
    %v1054 = vadd.f32 %v308, %v1048
    %v1055 = vadd.f32 %v310, %v1050
    %v1056 = vxor.u32 %v1052, 2147483648
    %v1057 = vmul.f32 %v1056, 1.442695
    %v1058 = vpow.pop %v1057
    %v1059 = vadd.f32 %v1058, 1.0
    %v1060 = vrcp.pop %v1059
    %v1061 = vmul.f32 1.0, %v1060
    %v1062 = vxor.u32 %v1053, 2147483648
    %v1063 = vmul.f32 %v1062, 1.442695
    %v1064 = vpow.pop %v1063
    %v1065 = vadd.f32 %v1064, 1.0
    %v1066 = vrcp.pop %v1065
    %v1067 = vmul.f32 1.0, %v1066
    %v1068 = vtanh.pop %v1054
    %v1069 = vxor.u32 %v1055, 2147483648
    %v1070 = vmul.f32 %v1069, 1.442695
    %v1071 = vpow.pop %v1070
    %v1072 = vadd.f32 %v1071, 1.0
    %v1073 = vrcp.pop %v1072
    %v1074 = vmul.f32 1.0, %v1073
    %v1075 = vmul.f32 %v1067, %v907
    %v1076 = vmul.f32 %v1061, %v1068
    %v1077 = vadd.f32 %v1075, %v1076
    %v1078 = vtanh.pop %v1077
    %v1079 = vmul.f32 %v1074, %v1078
    %1080 = vmatprep.subr.mxu0 %v337
    %1081 = vmatpush1.msra.mxu0 %v336
    %1082 = vmatprep.subr.mxu0 %v341
    %1083 = vmatpush1.msra.mxu0 %v340
    %1084 = vmatprep.subr.mxu0 %v345
    %1085 = vmatpush1.msra.mxu0 %v344
    %1086 = vmatprep.subr.mxu0 %v349
    %1087 = vmatpush1.msra.mxu0 %v348
    %1088 = vmatprep.subr.mxu0 %v353
    %1089 = vmatpush1.msra.mxu0 %v352
    %1090 = vmatprep.subr.mxu0 %v357
    %1091 = vmatpush1.msra.mxu0 %v356
    %1092 = vmatprep.subr.mxu0 %v361
    %1093 = vmatpush1.msra.mxu0 %v360
    %1094 = vmatprep.subr.mxu0 %v365
    %1095 = vmatpush1.msra.mxu0 %v364
    %1096 = vmatprep.subr.mxu0 %v369
    %1097 = vmatpush1.msra.mxu0 %v368
    %1098 = vmatprep.subr.mxu0 %v373
    %1099 = vmatpush1.msra.mxu0 %v372
    %1100 = vmatprep.subr.mxu0 %v377
    %1101 = vmatpush1.msra.mxu0 %v376
    %1102 = vmatprep.subr.mxu0 %v381
    %1103 = vmatpush1.msra.mxu0 %v380
    %1104 = vmatprep.subr.mxu0 %v385
    %1105 = vmatpush1.msra.mxu0 %v384
    %1106 = vmatprep.subr.mxu0 %v389
    %1107 = vmatpush1.msra.mxu0 %v388
    %1108 = vmatprep.subr.mxu0 %v393
    %1109 = vmatpush1.msra.mxu0 %v392
    %1110 = vmatprep.subr.mxu0 %v397
    %1111 = vmatpush1.msra.mxu0 %v396
    %1112 = vmatprep.subr.mxu0 0.0
    %1113 = vmatpush1.msra.mxu0 0.0
    %1114 = vmatprep.subr.mxu0 0.0
    %1115 = vmatpush1.msra.mxu0 0.0
    %1116 = vmatprep.subr.mxu0 0.0
    %1117 = vmatpush1.msra.mxu0 0.0
    %1118 = vmatprep.subr.mxu0 0.0
    %1119 = vmatpush1.msra.mxu0 0.0
    %1120 = vmatprep.subr.mxu0 0.0
    %1121 = vmatpush1.msra.mxu0 0.0
    %1122 = vmatprep.subr.mxu0 0.0
    %1123 = vmatpush1.msra.mxu0 0.0
    %1124 = vmatprep.subr.mxu0 0.0
    %1125 = vmatpush1.msra.mxu0 0.0
    %1126 = vmatprep.subr.mxu0 0.0
    %1127 = vmatpush1.msra.mxu0 0.0
    %1128 = vmatprep.subr.mxu0 0.0
    %1129 = vmatpush1.msra.mxu0 0.0
    %1130 = vmatprep.subr.mxu0 0.0
    %1131 = vmatpush1.msra.mxu0 0.0
    %1132 = vmatprep.subr.mxu0 0.0
    %1133 = vmatpush1.msra.mxu0 0.0
    %1134 = vmatprep.subr.mxu0 0.0
    %1135 = vmatpush1.msra.mxu0 0.0
    %1136 = vmatprep.subr.mxu0 0.0
    %1137 = vmatpush1.msra.mxu0 0.0
    %1138 = vmatprep.subr.mxu0 0.0
    %1139 = vmatpush1.msra.mxu0 0.0
    %1140 = vmatprep.subr.mxu0 0.0
    %1141 = vmatpush1.msra.mxu0 0.0
    %1142 = vmatprep.subr.mxu0 0.0
    %1143 = vmatpush1.msra.mxu0 0.0
    %1144 = vmatprep.mubr.f32.mxu0 0.0
    %1145 = vmatmul.mubr.f32.gmra.mrb[0].mxu0 %v1079
    %v1146 = vpop.f32.mrb[0].mxu0
    %v1147 = vadd.f32 0.0, %v1146
    %v1148 = vpop.f32.mrb[0].mxu0
    %v1149 = vadd.f32 0.0, %v1148
    %1150 = vdwg.mxu0
    %1151 = vmatprep.subr.mxu0 %v339
    %1152 = vmatpush1.msra.mxu0 %v338
    %1153 = vmatprep.subr.mxu0 %v343
    %1154 = vmatpush1.msra.mxu0 %v342
    %1155 = vmatprep.subr.mxu0 %v347
    %1156 = vmatpush1.msra.mxu0 %v346
    %1157 = vmatprep.subr.mxu0 %v351
    %1158 = vmatpush1.msra.mxu0 %v350
    %1159 = vmatprep.subr.mxu0 %v355
    %1160 = vmatpush1.msra.mxu0 %v354
    %1161 = vmatprep.subr.mxu0 %v359
    %1162 = vmatpush1.msra.mxu0 %v358
    %1163 = vmatprep.subr.mxu0 %v363
    %1164 = vmatpush1.msra.mxu0 %v362
    %1165 = vmatprep.subr.mxu0 %v367
    %1166 = vmatpush1.msra.mxu0 %v366
    %1167 = vmatprep.subr.mxu0 %v371
    %1168 = vmatpush1.msra.mxu0 %v370
    %1169 = vmatprep.subr.mxu0 %v375
    %1170 = vmatpush1.msra.mxu0 %v374
    %1171 = vmatprep.subr.mxu0 %v379
    %1172 = vmatpush1.msra.mxu0 %v378
    %1173 = vmatprep.subr.mxu0 %v383
    %1174 = vmatpush1.msra.mxu0 %v382
    %1175 = vmatprep.subr.mxu0 %v387
    %1176 = vmatpush1.msra.mxu0 %v386
    %1177 = vmatprep.subr.mxu0 %v391
    %1178 = vmatpush1.msra.mxu0 %v390
    %1179 = vmatprep.subr.mxu0 %v395
    %1180 = vmatpush1.msra.mxu0 %v394
    %1181 = vmatprep.subr.mxu0 %v399
    %1182 = vmatpush1.msra.mxu0 %v398
    %1183 = vmatprep.subr.mxu0 0.0
    %1184 = vmatpush1.msra.mxu0 0.0
    %1185 = vmatprep.subr.mxu0 0.0
    %1186 = vmatpush1.msra.mxu0 0.0
    %1187 = vmatprep.subr.mxu0 0.0
    %1188 = vmatpush1.msra.mxu0 0.0
    %1189 = vmatprep.subr.mxu0 0.0
    %1190 = vmatpush1.msra.mxu0 0.0
    %1191 = vmatprep.subr.mxu0 0.0
    %1192 = vmatpush1.msra.mxu0 0.0
    %1193 = vmatprep.subr.mxu0 0.0
    %1194 = vmatpush1.msra.mxu0 0.0
    %1195 = vmatprep.subr.mxu0 0.0
    %1196 = vmatpush1.msra.mxu0 0.0
    %1197 = vmatprep.subr.mxu0 0.0
    %1198 = vmatpush1.msra.mxu0 0.0
    %1199 = vmatprep.subr.mxu0 0.0
    %1200 = vmatpush1.msra.mxu0 0.0
    %1201 = vmatprep.subr.mxu0 0.0
    %1202 = vmatpush1.msra.mxu0 0.0
    %1203 = vmatprep.subr.mxu0 0.0
    %1204 = vmatpush1.msra.mxu0 0.0
    %1205 = vmatprep.subr.mxu0 0.0
    %1206 = vmatpush1.msra.mxu0 0.0
    %1207 = vmatprep.subr.mxu0 0.0
    %1208 = vmatpush1.msra.mxu0 0.0
    %1209 = vmatprep.subr.mxu0 0.0
    %1210 = vmatpush1.msra.mxu0 0.0
    %1211 = vmatprep.subr.mxu0 0.0
    %1212 = vmatpush1.msra.mxu0 0.0
    %1213 = vmatprep.subr.mxu0 0.0
    %1214 = vmatpush1.msra.mxu0 0.0
    %1215 = vmatprep.mubr.f32.mxu0 0.0
    %1216 = vmatmul.mubr.f32.gmra.mrb[0].mxu0 %v1079
    %v1217 = vpop.f32.mrb[0].mxu0
    %v1218 = vadd.f32 0.0, %v1217
    %v1219 = vpop.f32.mrb[0].mxu0
    %v1220 = vadd.f32 0.0, %v1219
    %1221 = vdwg.mxu0
    %v1222 = vadd.f32 %v201, %v1147
    %v1223 = vadd.f32 %v203, %v1149
    %v1224 = vadd.f32 %v314, %v1218
    %v1225 = vadd.f32 %v316, %v1220
    %v1226 = vxor.u32 %v1222, 2147483648
    %v1227 = vmul.f32 %v1226, 1.442695
    %v1228 = vpow.pop %v1227
    %v1229 = vadd.f32 %v1228, 1.0
    %v1230 = vrcp.pop %v1229
    %v1231 = vmul.f32 1.0, %v1230
    %v1232 = vxor.u32 %v1223, 2147483648
    %v1233 = vmul.f32 %v1232, 1.442695
    %v1234 = vpow.pop %v1233
    %v1235 = vadd.f32 %v1234, 1.0
    %v1236 = vrcp.pop %v1235
    %v1237 = vmul.f32 1.0, %v1236
    %v1238 = vtanh.pop %v1224
    %v1239 = vxor.u32 %v1225, 2147483648
    %v1240 = vmul.f32 %v1239, 1.442695
    %v1241 = vpow.pop %v1240
    %v1242 = vadd.f32 %v1241, 1.0
    %v1243 = vrcp.pop %v1242
    %v1244 = vmul.f32 1.0, %v1243
    %v1245 = vmul.f32 %v1237, %v1077
    %v1246 = vmul.f32 %v1231, %v1238
    %v1247 = vadd.f32 %v1245, %v1246
    %v1248 = vtanh.pop %v1247
    %v1249 = vmul.f32 %v1244, %v1248
    %1250 = vmatprep.subr.mxu0 %v337
    %1251 = vmatpush1.msra.mxu0 %v336
    %1252 = vmatprep.subr.mxu0 %v341
    %1253 = vmatpush1.msra.mxu0 %v340
    %1254 = vmatprep.subr.mxu0 %v345
    %1255 = vmatpush1.msra.mxu0 %v344
    %1256 = vmatprep.subr.mxu0 %v349
    %1257 = vmatpush1.msra.mxu0 %v348
    %1258 = vmatprep.subr.mxu0 %v353
    %1259 = vmatpush1.msra.mxu0 %v352
    %1260 = vmatprep.subr.mxu0 %v357
    %1261 = vmatpush1.msra.mxu0 %v356
    %1262 = vmatprep.subr.mxu0 %v361
    %1263 = vmatpush1.msra.mxu0 %v360
    %1264 = vmatprep.subr.mxu0 %v365
    %1265 = vmatpush1.msra.mxu0 %v364
    %1266 = vmatprep.subr.mxu0 %v369
    %1267 = vmatpush1.msra.mxu0 %v368
    %1268 = vmatprep.subr.mxu0 %v373
    %1269 = vmatpush1.msra.mxu0 %v372
    %1270 = vmatprep.subr.mxu0 %v377
    %1271 = vmatpush1.msra.mxu0 %v376
    %1272 = vmatprep.subr.mxu0 %v381
    %1273 = vmatpush1.msra.mxu0 %v380
    %1274 = vmatprep.subr.mxu0 %v385
    %1275 = vmatpush1.msra.mxu0 %v384
    %1276 = vmatprep.subr.mxu0 %v389
    %1277 = vmatpush1.msra.mxu0 %v388
    %1278 = vmatprep.subr.mxu0 %v393
    %1279 = vmatpush1.msra.mxu0 %v392
    %1280 = vmatprep.subr.mxu0 %v397
    %1281 = vmatpush1.msra.mxu0 %v396
    %1282 = vmatprep.subr.mxu0 0.0
    %1283 = vmatpush1.msra.mxu0 0.0
    %1284 = vmatprep.subr.mxu0 0.0
    %1285 = vmatpush1.msra.mxu0 0.0
    %1286 = vmatprep.subr.mxu0 0.0
    %1287 = vmatpush1.msra.mxu0 0.0
    %1288 = vmatprep.subr.mxu0 0.0
    %1289 = vmatpush1.msra.mxu0 0.0
    %1290 = vmatprep.subr.mxu0 0.0
    %1291 = vmatpush1.msra.mxu0 0.0
    %1292 = vmatprep.subr.mxu0 0.0
    %1293 = vmatpush1.msra.mxu0 0.0
    %1294 = vmatprep.subr.mxu0 0.0
    %1295 = vmatpush1.msra.mxu0 0.0
    %1296 = vmatprep.subr.mxu0 0.0
    %1297 = vmatpush1.msra.mxu0 0.0
    %1298 = vmatprep.subr.mxu0 0.0
    %1299 = vmatpush1.msra.mxu0 0.0
    %1300 = vmatprep.subr.mxu0 0.0
    %1301 = vmatpush1.msra.mxu0 0.0
    %1302 = vmatprep.subr.mxu0 0.0
    %1303 = vmatpush1.msra.mxu0 0.0
    %1304 = vmatprep.subr.mxu0 0.0
    %1305 = vmatpush1.msra.mxu0 0.0
    %1306 = vmatprep.subr.mxu0 0.0
    %1307 = vmatpush1.msra.mxu0 0.0
    %1308 = vmatprep.subr.mxu0 0.0
    %1309 = vmatpush1.msra.mxu0 0.0
    %1310 = vmatprep.subr.mxu0 0.0
    %1311 = vmatpush1.msra.mxu0 0.0
    %1312 = vmatprep.subr.mxu0 0.0
    %1313 = vmatpush1.msra.mxu0 0.0
    %1314 = vmatprep.mubr.f32.mxu0 0.0
    %1315 = vmatmul.mubr.f32.gmra.mrb[0].mxu0 %v1249
    %v1316 = vpop.f32.mrb[0].mxu0
    %v1317 = vadd.f32 0.0, %v1316
    %v1318 = vpop.f32.mrb[0].mxu0
    %v1319 = vadd.f32 0.0, %v1318
    %1320 = vdwg.mxu0
    %1321 = vmatprep.subr.mxu0 %v339
    %1322 = vmatpush1.msra.mxu0 %v338
    %1323 = vmatprep.subr.mxu0 %v343
    %1324 = vmatpush1.msra.mxu0 %v342
    %1325 = vmatprep.subr.mxu0 %v347
    %1326 = vmatpush1.msra.mxu0 %v346
    %1327 = vmatprep.subr.mxu0 %v351
    %1328 = vmatpush1.msra.mxu0 %v350
    %1329 = vmatprep.subr.mxu0 %v355
    %1330 = vmatpush1.msra.mxu0 %v354
    %1331 = vmatprep.subr.mxu0 %v359
    %1332 = vmatpush1.msra.mxu0 %v358
    %1333 = vmatprep.subr.mxu0 %v363
    %1334 = vmatpush1.msra.mxu0 %v362
    %1335 = vmatprep.subr.mxu0 %v367
    %1336 = vmatpush1.msra.mxu0 %v366
    %1337 = vmatprep.subr.mxu0 %v371
    %1338 = vmatpush1.msra.mxu0 %v370
    %1339 = vmatprep.subr.mxu0 %v375
    %1340 = vmatpush1.msra.mxu0 %v374
    %1341 = vmatprep.subr.mxu0 %v379
    %1342 = vmatpush1.msra.mxu0 %v378
    %1343 = vmatprep.subr.mxu0 %v383
    %1344 = vmatpush1.msra.mxu0 %v382
    %1345 = vmatprep.subr.mxu0 %v387
    %1346 = vmatpush1.msra.mxu0 %v386
    %1347 = vmatprep.subr.mxu0 %v391
    %1348 = vmatpush1.msra.mxu0 %v390
    %1349 = vmatprep.subr.mxu0 %v395
    %1350 = vmatpush1.msra.mxu0 %v394
    %1351 = vmatprep.subr.mxu0 %v399
    %1352 = vmatpush1.msra.mxu0 %v398
    %1353 = vmatprep.subr.mxu0 0.0
    %1354 = vmatpush1.msra.mxu0 0.0
    %1355 = vmatprep.subr.mxu0 0.0
    %1356 = vmatpush1.msra.mxu0 0.0
    %1357 = vmatprep.subr.mxu0 0.0
    %1358 = vmatpush1.msra.mxu0 0.0
    %1359 = vmatprep.subr.mxu0 0.0
    %1360 = vmatpush1.msra.mxu0 0.0
    %1361 = vmatprep.subr.mxu0 0.0
    %1362 = vmatpush1.msra.mxu0 0.0
    %1363 = vmatprep.subr.mxu0 0.0
    %1364 = vmatpush1.msra.mxu0 0.0
    %1365 = vmatprep.subr.mxu0 0.0
    %1366 = vmatpush1.msra.mxu0 0.0
    %1367 = vmatprep.subr.mxu0 0.0
    %1368 = vmatpush1.msra.mxu0 0.0
    %1369 = vmatprep.subr.mxu0 0.0
    %1370 = vmatpush1.msra.mxu0 0.0
    %1371 = vmatprep.subr.mxu0 0.0
    %1372 = vmatpush1.msra.mxu0 0.0
    %1373 = vmatprep.subr.mxu0 0.0
    %1374 = vmatpush1.msra.mxu0 0.0
    %1375 = vmatprep.subr.mxu0 0.0
    %1376 = vmatpush1.msra.mxu0 0.0
    %1377 = vmatprep.subr.mxu0 0.0
    %1378 = vmatpush1.msra.mxu0 0.0
    %1379 = vmatprep.subr.mxu0 0.0
    %1380 = vmatpush1.msra.mxu0 0.0
    %1381 = vmatprep.subr.mxu0 0.0
    %1382 = vmatpush1.msra.mxu0 0.0
    %1383 = vmatprep.subr.mxu0 0.0
    %1384 = vmatpush1.msra.mxu0 0.0
    %1385 = vmatprep.mubr.f32.mxu0 0.0
    %1386 = vmatmul.mubr.f32.gmra.mrb[0].mxu0 %v1249
    %v1387 = vpop.f32.mrb[0].mxu0
    %v1388 = vadd.f32 0.0, %v1387
    %v1389 = vpop.f32.mrb[0].mxu0
    %v1390 = vadd.f32 0.0, %v1389
    %1391 = vdwg.mxu0
    %v1392 = vadd.f32 %v207, %v1317
    %v1393 = vadd.f32 %v209, %v1319
    %v1394 = vadd.f32 %v320, %v1388
    %v1395 = vadd.f32 %v322, %v1390
    %v1396 = vxor.u32 %v1392, 2147483648
    %v1397 = vmul.f32 %v1396, 1.442695
    %v1398 = vpow.pop %v1397
    %v1399 = vadd.f32 %v1398, 1.0
    %v1400 = vrcp.pop %v1399
    %v1401 = vmul.f32 1.0, %v1400
    %v1402 = vxor.u32 %v1393, 2147483648
    %v1403 = vmul.f32 %v1402, 1.442695
    %v1404 = vpow.pop %v1403
    %v1405 = vadd.f32 %v1404, 1.0
    %v1406 = vrcp.pop %v1405
    %v1407 = vmul.f32 1.0, %v1406
    %v1408 = vtanh.pop %v1394
    %v1409 = vxor.u32 %v1395, 2147483648
    %v1410 = vmul.f32 %v1409, 1.442695
    %v1411 = vpow.pop %v1410
    %v1412 = vadd.f32 %v1411, 1.0
    %v1413 = vrcp.pop %v1412
    %v1414 = vmul.f32 1.0, %v1413
    %v1415 = vmul.f32 %v1407, %v1247
    %v1416 = vmul.f32 %v1401, %v1408
    %v1417 = vadd.f32 %v1415, %v1416
    %v1418 = vtanh.pop %v1417
    %v1419 = vmul.f32 %v1414, %v1418
    %1420 = vmatprep.subr.mxu0 %v337
    %1421 = vmatpush1.msra.mxu0 %v336
    %1422 = vmatprep.subr.mxu0 %v341
    %1423 = vmatpush1.msra.mxu0 %v340
    %1424 = vmatprep.subr.mxu0 %v345
    %1425 = vmatpush1.msra.mxu0 %v344
    %1426 = vmatprep.subr.mxu0 %v349
    %1427 = vmatpush1.msra.mxu0 %v348
    %1428 = vmatprep.subr.mxu0 %v353
    %1429 = vmatpush1.msra.mxu0 %v352
    %1430 = vmatprep.subr.mxu0 %v357
    %1431 = vmatpush1.msra.mxu0 %v356
    %1432 = vmatprep.subr.mxu0 %v361
    %1433 = vmatpush1.msra.mxu0 %v360
    %1434 = vmatprep.subr.mxu0 %v365
    %1435 = vmatpush1.msra.mxu0 %v364
    %1436 = vmatprep.subr.mxu0 %v369
    %1437 = vmatpush1.msra.mxu0 %v368
    %1438 = vmatprep.subr.mxu0 %v373
    %1439 = vmatpush1.msra.mxu0 %v372
    %1440 = vmatprep.subr.mxu0 %v377
    %1441 = vmatpush1.msra.mxu0 %v376
    %1442 = vmatprep.subr.mxu0 %v381
    %1443 = vmatpush1.msra.mxu0 %v380
    %1444 = vmatprep.subr.mxu0 %v385
    %1445 = vmatpush1.msra.mxu0 %v384
    %1446 = vmatprep.subr.mxu0 %v389
    %1447 = vmatpush1.msra.mxu0 %v388
    %1448 = vmatprep.subr.mxu0 %v393
    %1449 = vmatpush1.msra.mxu0 %v392
    %1450 = vmatprep.subr.mxu0 %v397
    %1451 = vmatpush1.msra.mxu0 %v396
    %1452 = vmatprep.subr.mxu0 0.0
    %1453 = vmatpush1.msra.mxu0 0.0
    %1454 = vmatprep.subr.mxu0 0.0
    %1455 = vmatpush1.msra.mxu0 0.0
    %1456 = vmatprep.subr.mxu0 0.0
    %1457 = vmatpush1.msra.mxu0 0.0
    %1458 = vmatprep.subr.mxu0 0.0
    %1459 = vmatpush1.msra.mxu0 0.0
    %1460 = vmatprep.subr.mxu0 0.0
    %1461 = vmatpush1.msra.mxu0 0.0
    %1462 = vmatprep.subr.mxu0 0.0
    %1463 = vmatpush1.msra.mxu0 0.0
    %1464 = vmatprep.subr.mxu0 0.0
    %1465 = vmatpush1.msra.mxu0 0.0
    %1466 = vmatprep.subr.mxu0 0.0
    %1467 = vmatpush1.msra.mxu0 0.0
    %1468 = vmatprep.subr.mxu0 0.0
    %1469 = vmatpush1.msra.mxu0 0.0
    %1470 = vmatprep.subr.mxu0 0.0
    %1471 = vmatpush1.msra.mxu0 0.0
    %1472 = vmatprep.subr.mxu0 0.0
    %1473 = vmatpush1.msra.mxu0 0.0
    %1474 = vmatprep.subr.mxu0 0.0
    %1475 = vmatpush1.msra.mxu0 0.0
    %1476 = vmatprep.subr.mxu0 0.0
    %1477 = vmatpush1.msra.mxu0 0.0
    %1478 = vmatprep.subr.mxu0 0.0
    %1479 = vmatpush1.msra.mxu0 0.0
    %1480 = vmatprep.subr.mxu0 0.0
    %1481 = vmatpush1.msra.mxu0 0.0
    %1482 = vmatprep.subr.mxu0 0.0
    %1483 = vmatpush1.msra.mxu0 0.0
    %1484 = vmatprep.mubr.f32.mxu0 0.0
    %1485 = vmatmul.mubr.f32.gmra.mrb[0].mxu0 %v1419
    %v1486 = vpop.f32.mrb[0].mxu0
    %v1487 = vadd.f32 0.0, %v1486
    %v1488 = vpop.f32.mrb[0].mxu0
    %v1489 = vadd.f32 0.0, %v1488
    %1490 = vdwg.mxu0
    %1491 = vmatprep.subr.mxu0 %v339
    %1492 = vmatpush1.msra.mxu0 %v338
    %1493 = vmatprep.subr.mxu0 %v343
    %1494 = vmatpush1.msra.mxu0 %v342
    %1495 = vmatprep.subr.mxu0 %v347
    %1496 = vmatpush1.msra.mxu0 %v346
    %1497 = vmatprep.subr.mxu0 %v351
    %1498 = vmatpush1.msra.mxu0 %v350
    %1499 = vmatprep.subr.mxu0 %v355
    %1500 = vmatpush1.msra.mxu0 %v354
    %1501 = vmatprep.subr.mxu0 %v359
    %1502 = vmatpush1.msra.mxu0 %v358
    %1503 = vmatprep.subr.mxu0 %v363
    %1504 = vmatpush1.msra.mxu0 %v362
    %1505 = vmatprep.subr.mxu0 %v367
    %1506 = vmatpush1.msra.mxu0 %v366
    %1507 = vmatprep.subr.mxu0 %v371
    %1508 = vmatpush1.msra.mxu0 %v370
    %1509 = vmatprep.subr.mxu0 %v375
    %1510 = vmatpush1.msra.mxu0 %v374
    %1511 = vmatprep.subr.mxu0 %v379
    %1512 = vmatpush1.msra.mxu0 %v378
    %1513 = vmatprep.subr.mxu0 %v383
    %1514 = vmatpush1.msra.mxu0 %v382
    %1515 = vmatprep.subr.mxu0 %v387
    %1516 = vmatpush1.msra.mxu0 %v386
    %1517 = vmatprep.subr.mxu0 %v391
    %1518 = vmatpush1.msra.mxu0 %v390
    %1519 = vmatprep.subr.mxu0 %v395
    %1520 = vmatpush1.msra.mxu0 %v394
    %1521 = vmatprep.subr.mxu0 %v399
    %1522 = vmatpush1.msra.mxu0 %v398
    %1523 = vmatprep.subr.mxu0 0.0
    %1524 = vmatpush1.msra.mxu0 0.0
    %1525 = vmatprep.subr.mxu0 0.0
    %1526 = vmatpush1.msra.mxu0 0.0
    %1527 = vmatprep.subr.mxu0 0.0
    %1528 = vmatpush1.msra.mxu0 0.0
    %1529 = vmatprep.subr.mxu0 0.0
    %1530 = vmatpush1.msra.mxu0 0.0
    %1531 = vmatprep.subr.mxu0 0.0
    %1532 = vmatpush1.msra.mxu0 0.0
    %1533 = vmatprep.subr.mxu0 0.0
    %1534 = vmatpush1.msra.mxu0 0.0
    %1535 = vmatprep.subr.mxu0 0.0
    %1536 = vmatpush1.msra.mxu0 0.0
    %1537 = vmatprep.subr.mxu0 0.0
    %1538 = vmatpush1.msra.mxu0 0.0
    %1539 = vmatprep.subr.mxu0 0.0
    %1540 = vmatpush1.msra.mxu0 0.0
    %1541 = vmatprep.subr.mxu0 0.0
    %1542 = vmatpush1.msra.mxu0 0.0
    %1543 = vmatprep.subr.mxu0 0.0
    %1544 = vmatpush1.msra.mxu0 0.0
    %1545 = vmatprep.subr.mxu0 0.0
    %1546 = vmatpush1.msra.mxu0 0.0
    %1547 = vmatprep.subr.mxu0 0.0
    %1548 = vmatpush1.msra.mxu0 0.0
    %1549 = vmatprep.subr.mxu0 0.0
    %1550 = vmatpush1.msra.mxu0 0.0
    %1551 = vmatprep.subr.mxu0 0.0
    %1552 = vmatpush1.msra.mxu0 0.0
    %1553 = vmatprep.subr.mxu0 0.0
    %1554 = vmatpush1.msra.mxu0 0.0
    %1555 = vmatprep.mubr.f32.mxu0 0.0
    %1556 = vmatmul.mubr.f32.gmra.mrb[0].mxu0 %v1419
    %v1557 = vpop.f32.mrb[0].mxu0
    %v1558 = vadd.f32 0.0, %v1557
    %v1559 = vpop.f32.mrb[0].mxu0
    %v1560 = vadd.f32 0.0, %v1559
    %1561 = vdwg.mxu0
    %v1562 = vadd.f32 %v213, %v1487
    %v1563 = vadd.f32 %v215, %v1489
    %v1564 = vadd.f32 %v326, %v1558
    %v1565 = vadd.f32 %v328, %v1560
    %v1566 = vxor.u32 %v1562, 2147483648
    %v1567 = vmul.f32 %v1566, 1.442695
    %v1568 = vpow.pop %v1567
    %v1569 = vadd.f32 %v1568, 1.0
    %v1570 = vrcp.pop %v1569
    %v1571 = vmul.f32 1.0, %v1570
    %v1572 = vxor.u32 %v1563, 2147483648
    %v1573 = vmul.f32 %v1572, 1.442695
    %v1574 = vpow.pop %v1573
    %v1575 = vadd.f32 %v1574, 1.0
    %v1576 = vrcp.pop %v1575
    %v1577 = vmul.f32 1.0, %v1576
    %v1578 = vtanh.pop %v1564
    %v1579 = vxor.u32 %v1565, 2147483648
    %v1580 = vmul.f32 %v1579, 1.442695
    %v1581 = vpow.pop %v1580
    %v1582 = vadd.f32 %v1581, 1.0
    %v1583 = vrcp.pop %v1582
    %v1584 = vmul.f32 1.0, %v1583
    %v1585 = vmul.f32 %v1577, %v1417
    %v1586 = vmul.f32 %v1571, %v1578
    %v1587 = vadd.f32 %v1585, %v1586
    %v1588 = vtanh.pop %v1587
    %v1589 = vmul.f32 %v1584, %v1588
    %1590 = vmatprep.subr.mxu0 %v337
    %1591 = vmatpush1.msra.mxu0 %v336
    %1592 = vmatprep.subr.mxu0 %v341
    %1593 = vmatpush1.msra.mxu0 %v340
    %1594 = vmatprep.subr.mxu0 %v345
    %1595 = vmatpush1.msra.mxu0 %v344
    %1596 = vmatprep.subr.mxu0 %v349
    %1597 = vmatpush1.msra.mxu0 %v348
    %1598 = vmatprep.subr.mxu0 %v353
    %1599 = vmatpush1.msra.mxu0 %v352
    %1600 = vmatprep.subr.mxu0 %v357
    %1601 = vmatpush1.msra.mxu0 %v356
    %1602 = vmatprep.subr.mxu0 %v361
    %1603 = vmatpush1.msra.mxu0 %v360
    %1604 = vmatprep.subr.mxu0 %v365
    %1605 = vmatpush1.msra.mxu0 %v364
    %1606 = vmatprep.subr.mxu0 %v369
    %1607 = vmatpush1.msra.mxu0 %v368
    %1608 = vmatprep.subr.mxu0 %v373
    %1609 = vmatpush1.msra.mxu0 %v372
    %1610 = vmatprep.subr.mxu0 %v377
    %1611 = vmatpush1.msra.mxu0 %v376
    %1612 = vmatprep.subr.mxu0 %v381
    %1613 = vmatpush1.msra.mxu0 %v380
    %1614 = vmatprep.subr.mxu0 %v385
    %1615 = vmatpush1.msra.mxu0 %v384
    %1616 = vmatprep.subr.mxu0 %v389
    %1617 = vmatpush1.msra.mxu0 %v388
    %1618 = vmatprep.subr.mxu0 %v393
    %1619 = vmatpush1.msra.mxu0 %v392
    %1620 = vmatprep.subr.mxu0 %v397
    %1621 = vmatpush1.msra.mxu0 %v396
    %1622 = vmatprep.subr.mxu0 0.0
    %1623 = vmatpush1.msra.mxu0 0.0
    %1624 = vmatprep.subr.mxu0 0.0
    %1625 = vmatpush1.msra.mxu0 0.0
    %1626 = vmatprep.subr.mxu0 0.0
    %1627 = vmatpush1.msra.mxu0 0.0
    %1628 = vmatprep.subr.mxu0 0.0
    %1629 = vmatpush1.msra.mxu0 0.0
    %1630 = vmatprep.subr.mxu0 0.0
    %1631 = vmatpush1.msra.mxu0 0.0
    %1632 = vmatprep.subr.mxu0 0.0
    %1633 = vmatpush1.msra.mxu0 0.0
    %1634 = vmatprep.subr.mxu0 0.0
    %1635 = vmatpush1.msra.mxu0 0.0
    %1636 = vmatprep.subr.mxu0 0.0
    %1637 = vmatpush1.msra.mxu0 0.0
    %1638 = vmatprep.subr.mxu0 0.0
    %1639 = vmatpush1.msra.mxu0 0.0
    %1640 = vmatprep.subr.mxu0 0.0
    %1641 = vmatpush1.msra.mxu0 0.0
    %1642 = vmatprep.subr.mxu0 0.0
    %1643 = vmatpush1.msra.mxu0 0.0
    %1644 = vmatprep.subr.mxu0 0.0
    %1645 = vmatpush1.msra.mxu0 0.0
    %1646 = vmatprep.subr.mxu0 0.0
    %1647 = vmatpush1.msra.mxu0 0.0
    %1648 = vmatprep.subr.mxu0 0.0
    %1649 = vmatpush1.msra.mxu0 0.0
    %1650 = vmatprep.subr.mxu0 0.0
    %1651 = vmatpush1.msra.mxu0 0.0
    %1652 = vmatprep.subr.mxu0 0.0
    %1653 = vmatpush1.msra.mxu0 0.0
    %1654 = vmatprep.mubr.f32.mxu0 0.0
    %1655 = vmatmul.mubr.f32.gmra.mrb[0].mxu0 %v1589
    %v1656 = vpop.f32.mrb[0].mxu0
    %v1657 = vadd.f32 0.0, %v1656
    %v1658 = vpop.f32.mrb[0].mxu0
    %v1659 = vadd.f32 0.0, %v1658
    %1660 = vdwg.mxu0
    %1661 = vmatprep.subr.mxu0 %v339
    %1662 = vmatpush1.msra.mxu0 %v338
    %1663 = vmatprep.subr.mxu0 %v343
    %1664 = vmatpush1.msra.mxu0 %v342
    %1665 = vmatprep.subr.mxu0 %v347
    %1666 = vmatpush1.msra.mxu0 %v346
    %1667 = vmatprep.subr.mxu0 %v351
    %1668 = vmatpush1.msra.mxu0 %v350
    %1669 = vmatprep.subr.mxu0 %v355
    %1670 = vmatpush1.msra.mxu0 %v354
    %1671 = vmatprep.subr.mxu0 %v359
    %1672 = vmatpush1.msra.mxu0 %v358
    %1673 = vmatprep.subr.mxu0 %v363
    %1674 = vmatpush1.msra.mxu0 %v362
    %1675 = vmatprep.subr.mxu0 %v367
    %1676 = vmatpush1.msra.mxu0 %v366
    %1677 = vmatprep.subr.mxu0 %v371
    %1678 = vmatpush1.msra.mxu0 %v370
    %1679 = vmatprep.subr.mxu0 %v375
    %1680 = vmatpush1.msra.mxu0 %v374
    %1681 = vmatprep.subr.mxu0 %v379
    %1682 = vmatpush1.msra.mxu0 %v378
    %1683 = vmatprep.subr.mxu0 %v383
    %1684 = vmatpush1.msra.mxu0 %v382
    %1685 = vmatprep.subr.mxu0 %v387
    %1686 = vmatpush1.msra.mxu0 %v386
    %1687 = vmatprep.subr.mxu0 %v391
    %1688 = vmatpush1.msra.mxu0 %v390
    %1689 = vmatprep.subr.mxu0 %v395
    %1690 = vmatpush1.msra.mxu0 %v394
    %1691 = vmatprep.subr.mxu0 %v399
    %1692 = vmatpush1.msra.mxu0 %v398
    %1693 = vmatprep.subr.mxu0 0.0
    %1694 = vmatpush1.msra.mxu0 0.0
    %1695 = vmatprep.subr.mxu0 0.0
    %1696 = vmatpush1.msra.mxu0 0.0
    %1697 = vmatprep.subr.mxu0 0.0
    %1698 = vmatpush1.msra.mxu0 0.0
    %1699 = vmatprep.subr.mxu0 0.0
    %1700 = vmatpush1.msra.mxu0 0.0
    %1701 = vmatprep.subr.mxu0 0.0
    %1702 = vmatpush1.msra.mxu0 0.0
    %1703 = vmatprep.subr.mxu0 0.0
    %1704 = vmatpush1.msra.mxu0 0.0
    %1705 = vmatprep.subr.mxu0 0.0
    %1706 = vmatpush1.msra.mxu0 0.0
    %1707 = vmatprep.subr.mxu0 0.0
    %1708 = vmatpush1.msra.mxu0 0.0
    %1709 = vmatprep.subr.mxu0 0.0
    %1710 = vmatpush1.msra.mxu0 0.0
    %1711 = vmatprep.subr.mxu0 0.0
    %1712 = vmatpush1.msra.mxu0 0.0
    %1713 = vmatprep.subr.mxu0 0.0
    %1714 = vmatpush1.msra.mxu0 0.0
    %1715 = vmatprep.subr.mxu0 0.0
    %1716 = vmatpush1.msra.mxu0 0.0
    %1717 = vmatprep.subr.mxu0 0.0
    %1718 = vmatpush1.msra.mxu0 0.0
    %1719 = vmatprep.subr.mxu0 0.0
    %1720 = vmatpush1.msra.mxu0 0.0
    %1721 = vmatprep.subr.mxu0 0.0
    %1722 = vmatpush1.msra.mxu0 0.0
    %1723 = vmatprep.subr.mxu0 0.0
    %1724 = vmatpush1.msra.mxu0 0.0
    %1725 = vmatprep.mubr.f32.mxu0 0.0
    %1726 = vmatmul.mubr.f32.gmra.mrb[0].mxu0 %v1589
    %v1727 = vpop.f32.mrb[0].mxu0
    %v1728 = vadd.f32 0.0, %v1727
    %v1729 = vpop.f32.mrb[0].mxu0
    %v1730 = vadd.f32 0.0, %v1729
    %1731 = vdwg.mxu0
    %v1732 = vadd.f32 %v219, %v1657
    %v1733 = vadd.f32 %v221, %v1659
    %v1734 = vadd.f32 %v332, %v1728
    %v1735 = vadd.f32 %v334, %v1730
    %v1736 = vxor.u32 %v1732, 2147483648
    %v1737 = vmul.f32 %v1736, 1.442695
    %v1738 = vpow.pop %v1737
    %v1739 = vadd.f32 %v1738, 1.0
    %v1740 = vrcp.pop %v1739
    %v1741 = vmul.f32 1.0, %v1740
    %v1742 = vxor.u32 %v1733, 2147483648
    %v1743 = vmul.f32 %v1742, 1.442695
    %v1744 = vpow.pop %v1743
    %v1745 = vadd.f32 %v1744, 1.0
    %v1746 = vrcp.pop %v1745
    %v1747 = vmul.f32 1.0, %v1746
    %v1748 = vtanh.pop %v1734
    %v1749 = vxor.u32 %v1735, 2147483648
    %v1750 = vmul.f32 %v1749, 1.442695
    %v1751 = vpow.pop %v1750
    %v1752 = vadd.f32 %v1751, 1.0
    %v1753 = vrcp.pop %v1752
    %v1754 = vmul.f32 1.0, %v1753
    %v1755 = vmul.f32 %v1747, %v1587
    %v1756 = vmul.f32 %v1741, %v1748
    %v1757 = vadd.f32 %v1755, %v1756
    %v1758 = vtanh.pop %v1757
    %v1759 = vmul.f32 %v1754, %v1758
    %v1760 = vld [vmem:[%s4] sm:$0xff]
    %v1761 = vld [vmem:[%s4 + $0x8] sm:$0xff]
    %v1762 = vld [vmem:[%s4 + $0x10] sm:$0xff]
    %v1763 = vld [vmem:[%s4 + $0x18] sm:$0xff]
    %v1764 = vld [vmem:[%s4 + $0x20] sm:$0xff]
    %v1765 = vld [vmem:[%s4 + $0x28] sm:$0xff]
    %v1766 = vld [vmem:[%s4 + $0x30] sm:$0xff]
    %v1767 = vld [vmem:[%s4 + $0x38] sm:$0xff]
    %v1768 = vld [vmem:[%s4 + $0x40] sm:$0xff]
    %v1769 = vld [vmem:[%s4 + $0x48] sm:$0xff]
    %v1770 = vld [vmem:[%s4 + $0x50] sm:$0xff]
    %v1771 = vld [vmem:[%s4 + $0x58] sm:$0xff]
    %v1772 = vld [vmem:[%s4 + $0x60] sm:$0xff]
    %v1773 = vld [vmem:[%s4 + $0x68] sm:$0xff]
    %v1774 = vld [vmem:[%s4 + $0x70] sm:$0xff]
    %v1775 = vld [vmem:[%s4 + $0x78] sm:$0xff]
    %v1776 = vld [vmem:[%s5] sm:$0x1]
    %v1778 = vlaneseq
    %v1779 = vshrl.u32 %v1778, 7
    %v1780 = vsub.s32 0, %v1779
    %v1781 = vrot.slane %v1776, %v1780
    %1783 = vmatprep.subr.mxu0 0.0
    %1784 = vmatpush1.msra.mxu0 %v1760
    %1785 = vmatprep.subr.mxu0 0.0
    %1786 = vmatpush1.msra.mxu0 %v1761
    %1787 = vmatprep.subr.mxu0 0.0
    %1788 = vmatpush1.msra.mxu0 %v1762
    %1789 = vmatprep.subr.mxu0 0.0
    %1790 = vmatpush1.msra.mxu0 %v1763
    %1791 = vmatprep.subr.mxu0 0.0
    %1792 = vmatpush1.msra.mxu0 %v1764
    %1793 = vmatprep.subr.mxu0 0.0
    %1794 = vmatpush1.msra.mxu0 %v1765
    %1795 = vmatprep.subr.mxu0 0.0
    %1796 = vmatpush1.msra.mxu0 %v1766
    %1797 = vmatprep.subr.mxu0 0.0
    %1798 = vmatpush1.msra.mxu0 %v1767
    %1799 = vmatprep.subr.mxu0 0.0
    %1800 = vmatpush1.msra.mxu0 %v1768
    %1801 = vmatprep.subr.mxu0 0.0
    %1802 = vmatpush1.msra.mxu0 %v1769
    %1803 = vmatprep.subr.mxu0 0.0
    %1804 = vmatpush1.msra.mxu0 %v1770
    %1805 = vmatprep.subr.mxu0 0.0
    %1806 = vmatpush1.msra.mxu0 %v1771
    %1807 = vmatprep.subr.mxu0 0.0
    %1808 = vmatpush1.msra.mxu0 %v1772
    %1809 = vmatprep.subr.mxu0 0.0
    %1810 = vmatpush1.msra.mxu0 %v1773
    %1811 = vmatprep.subr.mxu0 0.0
    %1812 = vmatpush1.msra.mxu0 %v1774
    %1813 = vmatprep.subr.mxu0 0.0
    %1814 = vmatpush1.msra.mxu0 %v1775
    %1815 = vmatprep.subr.mxu0 0.0
    %1816 = vmatpush1.msra.mxu0 0.0
    %1817 = vmatprep.subr.mxu0 0.0
    %1818 = vmatpush1.msra.mxu0 0.0
    %1819 = vmatprep.subr.mxu0 0.0
    %1820 = vmatpush1.msra.mxu0 0.0
    %1821 = vmatprep.subr.mxu0 0.0
    %1822 = vmatpush1.msra.mxu0 0.0
    %1823 = vmatprep.subr.mxu0 0.0
    %1824 = vmatpush1.msra.mxu0 0.0
    %1825 = vmatprep.subr.mxu0 0.0
    %1826 = vmatpush1.msra.mxu0 0.0
    %1827 = vmatprep.subr.mxu0 0.0
    %1828 = vmatpush1.msra.mxu0 0.0
    %1829 = vmatprep.subr.mxu0 0.0
    %1830 = vmatpush1.msra.mxu0 0.0
    %1831 = vmatprep.subr.mxu0 0.0
    %1832 = vmatpush1.msra.mxu0 0.0
    %1833 = vmatprep.subr.mxu0 0.0
    %1834 = vmatpush1.msra.mxu0 0.0
    %1835 = vmatprep.subr.mxu0 0.0
    %1836 = vmatpush1.msra.mxu0 0.0
    %1837 = vmatprep.subr.mxu0 0.0
    %1838 = vmatpush1.msra.mxu0 0.0
    %1839 = vmatprep.subr.mxu0 0.0
    %1840 = vmatpush1.msra.mxu0 0.0
    %1841 = vmatprep.subr.mxu0 0.0
    %1842 = vmatpush1.msra.mxu0 0.0
    %1843 = vmatprep.subr.mxu0 0.0
    %1844 = vmatpush1.msra.mxu0 0.0
    %1845 = vmatprep.subr.mxu0 0.0
    %1846 = vmatpush1.msra.mxu0 0.0
    %1847 = vmatprep.mubr.f32.mxu0 0.0
    %1848 = vmatmul.mubr.f32.gmra.mrb[0].mxu0 %v1759
    %v1849 = vpop.f32.mrb[0].mxu0
    %v1850 = vadd.f32 %v1781, %v1849
    %v1851 = vpop.f32.mrb[0].mxu0
    %1852 = vdwg.mxu0
    %vm1853 = vcmask 64512
    %1854 = vst.msk [vmem:[#allocation5] sm:$0xff] %vm1853, %v1850
    // Predicated region
    $region30: #{tpu_custom_call.1} parent=1 // pred_check
      _
    $region31: #{tpu_custom_call.1} parent=1 // pred_check_branch
      %1856 = sbr.rel (0) target = $region33
    $region32: #{tpu_custom_call.1} parent=1 // pred_region
      %s1858 = ssub.s32 128, 128
      %1859 = vsyncadd [#allocation4], %s1858
      %s1861 = sshll.u32 [#allocation5], 4
      %s1862 = int_to_ptr.vmem [resolvable:$true] %s1861
      %1864 = dma.vmem_to_hbm [thread:$0]  %s1862, 128, %s6, [#allocation4]
    $region33: #{tpu_custom_call.1} parent=1 // pred_fallthru
      _
    // Predicated region
    $region34: #{tpu_custom_call.1} parent=1 // pred_check
      _
    $region35: #{tpu_custom_call.1} parent=1 // pred_check_branch
      %1866 = sbr.rel (0) target = $region37
    $region36: #{tpu_custom_call.1} parent=1 // pred_region
      %1867 = dma.done [#allocation4], 128
    $region37: #{tpu_custom_call.1} parent=1 // pred_fallthru
      _
    %1868 = vsyncpa [#allocation3], 1
    %1869 = vsyncpa [#allocation4], 1

</llo_original>
